<compile_context>
chip_gen: v6e
topology: v6e:2x2x1
jax: 0.10.0
libtpu: 0.0.40
codegen_flags: <defaults>
</compile_context>

<pallas_src>
import jax
import jax.numpy as jnp
from jax.experimental import pallas as pl
from jax.experimental.pallas import tpu as pltpu


def _round_up(x, m):
    return ((x + m - 1) // m) * m


# ----------------------------------------------------------------------------
# Fused attention kernel: one batch tile per grid step.
# ----------------------------------------------------------------------------
def _attention_kernel(x_ref, w_ref, len_ref, rep_ref, att_ref):
    # x_ref   : (tb, L, H)  native dtype   input features
    # w_ref   : (1, 1, H)   native dtype   attention weight vector
    # len_ref : (tb, 1, 1)  int32          valid sequence lengths
    # rep_ref : (tb, 1, H)  out dtype      pooled representations (output)
    # att_ref : (tb, 1, L)  out dtype      renormalised attention (output)
    x = x_ref[...]
    tb, L, H = x.shape

    # scores[b, 0, l] = <x[b, l, :], w>  — batched MXU contraction with f32
    # accumulation (no (tb, L, H) broadcast-multiply temporary).
    w_b = jnp.broadcast_to(w_ref[...], (tb, 1, H))
    scores = jnp.einsum("bkh,blh->bkl", w_b, x,
                        preferred_element_type=jnp.float32)          # (tb,1,L)

    # relu + softmax + length-mask renormalisation, algebraically fused:
    #   softmax(relu(s)) * mask / sum(softmax(relu(s)) * mask)
    #     == e * mask / sum(e * mask),   e = exp(relu(s) - max(relu(s)))
    s = jnp.maximum(scores, 0.0)
    m = jnp.max(s, axis=-1, keepdims=True)
    e = jnp.exp(s - m)                                               # EUP
    pos = jax.lax.broadcasted_iota(jnp.int32, (tb, 1, L), 2)
    mask = (pos < len_ref[...]).astype(jnp.float32)                  # (tb,1,L)
    em = e * mask
    # NOTE: a zero-length row gives 0/0 -> NaN, matching the torch reference.
    inv = pl.reciprocal(jnp.sum(em, axis=-1, keepdims=True), approx=True)
    att = em * inv                                                   # (tb,1,L)
    att_ref[...] = att.astype(att_ref.dtype)

    # rep[b, 0, h] = sum_l att[b, l] * x[b, l, h] — batched MXU contraction.
    rep = jnp.einsum("bkl,blh->bkh", att.astype(x.dtype), x,
                     preferred_element_type=jnp.float32)             # (tb,1,H)
    rep_ref[...] = rep.astype(rep_ref.dtype)


# ----------------------------------------------------------------------------
# Wrapper: padding, batch tiling, pallas_call.
# ----------------------------------------------------------------------------
def attention_forward(inputs, att_weights, lengths, *, batch_first=True,
                      block_b=None, interpret=False):
    """Forward pass of the PyTorch ``Attention`` module.

    inputs      : (B, L, H) if batch_first else (L, B, H)
    att_weights : (1, H)
    lengths     : (B,) int  (valid length of each sequence)
    returns (representations (B, H), attentions (B, L)) in inputs.dtype
    """
    # TODO(synk): with batch_first=False the original PyTorch bmm batches over
    # the *time* axis (almost certainly a bug); we implement the intended
    # batch-major math and simply transpose the input here.
    if not batch_first:
        inputs = jnp.transpose(inputs, (1, 0, 2))

    # Keep the big activation tensor in its native dtype: the kernel is HBM
    # bandwidth bound and the MXU accumulates bf16 x bf16 in f32 anyway.
    out_dtype = inputs.dtype
    in_itemsize = jnp.dtype(inputs.dtype).itemsize
    out_itemsize = jnp.dtype(out_dtype).itemsize
    att_weights = att_weights.reshape(1, 1, -1).astype(inputs.dtype)
    lengths = lengths.astype(jnp.int32)

    B, L, H = inputs.shape

    # ---- VMEM budget / batch-tile sizing (safe on v5e / v6e / v7x) --------
    try:
        vmem_cap = int(pltpu.get_tpu_info().vmem_capacity_bytes)
    except Exception:
        vmem_cap = 64 << 20          # v7x per-TC VMEM; conservative fallback
    vmem_limit = max(32 << 20, min((vmem_cap * 3) // 4, 96 << 20))

    if block_b is None:
        # Resident bytes per batch row inside one grid step:
        #   2x double-buffered input slab + broadcast weight copy
        #   + 2x double-buffered (rep, att) output tiles (8-sublane padded)
        #   + a handful of f32 (tb, 1, L) softmax temporaries.
        row_bytes = (2 * L * H * in_itemsize
                     + 8 * H * in_itemsize
                     + 2 * 8 * (H + L) * out_itemsize
                     + 6 * 8 * L * 4)
        budget = vmem_limit - (2 << 20)
        fit = max(8, (budget // max(row_bytes, 1)) // 8 * 8)
        block_b = int(min(fit, 256, _round_up(B, 8)))
        # v7x has 2 TensorCores: make sure the "parallel" batch grid axis has
        # at least 2 steps so both cores get work (no-op on v5e/v6e, 1 TC).
        if B >= 16 and block_b >= _round_up(B, 8):
            block_b = max(8, ((B // 2) // 8) * 8)
    block_b = max(8, (int(block_b) // 8) * 8)
    B_pad = _round_up(B, block_b)

    # Pad the batch: padded rows get zero features and length == L so every
    # in-kernel normalisation stays finite; they are sliced away afterwards.
    if B_pad != B:
        inputs = jnp.pad(inputs, ((0, B_pad - B), (0, 0), (0, 0)))
        lengths = jnp.pad(lengths, (0, B_pad - B), constant_values=L)
    lengths3d = lengths.reshape(B_pad, 1, 1)

    cost = pl.CostEstimate(
        flops=int(4 * B_pad * L * H),
        transcendentals=int(B_pad * L),
        bytes_accessed=int(B_pad * L * H * in_itemsize
                           + B_pad * (L + H) * out_itemsize
                           + B_pad * 4 + H * in_itemsize),
    )

    grid = (B_pad // block_b,)
    rep3, att3 = pl.pallas_call(
        _attention_kernel,
        out_shape=(
            jax.ShapeDtypeStruct((B_pad, 1, H), out_dtype),
            jax.ShapeDtypeStruct((B_pad, 1, L), out_dtype),
        ),
        grid=grid,
        in_specs=[
            pl.BlockSpec((block_b, L, H), lambda i: (i, 0, 0)),
            pl.BlockSpec((1, 1, H), lambda i: (0, 0, 0)),
            pl.BlockSpec((block_b, 1, 1), lambda i: (i, 0, 0)),
        ],
        out_specs=(
            pl.BlockSpec((block_b, 1, H), lambda i: (i, 0, 0)),
            pl.BlockSpec((block_b, 1, L), lambda i: (i, 0, 0)),
        ),
        compiler_params=pltpu.CompilerParams(
            dimension_semantics=("parallel",),
            vmem_limit_bytes=int(vmem_limit),
        ),
        cost_estimate=cost,
        interpret=interpret,
    )(inputs, att_weights, lengths3d)

    # TODO(synk): for very long sequences (a full-(L,H) slab too large even at
    # block_b=8) add a second "arbitrary" grid axis over L with an online-
    # softmax accumulation instead of keeping all of L resident.
    return rep3[:B, 0, :], att3[:B, 0, :]


# ----------------------------------------------------------------------------
# Pure-JAX reference (mirrors the PyTorch forward) for validation.
# ----------------------------------------------------------------------------
def _attention_reference(inputs, att_weights, lengths):
    x = inputs.astype(jnp.float32)
    w = att_weights.reshape(-1).astype(jnp.float32)
    scores = jnp.einsum("blh,h->bl", x, w)
    a = jax.nn.softmax(jax.nn.relu(scores), axis=-1)
    L = inputs.shape[1]
    mask = (jnp.arange(L)[None, :] < lengths[:, None]).astype(jnp.float32)
    masked = a * mask
    att = masked / masked.sum(-1, keepdims=True)
    rep = jnp.einsum("bl,blh->bh", att, x)
    return rep, att


if __name__ == "__main__":
    key = jax.random.PRNGKey(0)
    k_x, k_w = jax.random.split(key)

    batch, seq, hidden = 2, 8, 32

    inputs = jax.random.normal(k_x, (batch, seq, hidden), jnp.float32)
    stdv = 1.0 / (hidden ** 0.5)
    att_weights = jax.random.uniform(
        k_w, (1, hidden), jnp.float32, minval=-stdv, maxval=stdv)
    lengths = jnp.array([seq, 5], jnp.int32)   # second sequence is shorter

    # float32 path
    rep, att = attention_forward(inputs, att_weights, lengths, batch_first=True)
    jax.block_until_ready((rep, att))

    rep_ref, att_ref = _attention_reference(inputs, att_weights, lengths)
    assert rep.shape == (batch, hidden) and att.shape == (batch, seq)
    assert bool(jnp.allclose(rep, rep_ref, atol=2e-3, rtol=2e-3))
    assert bool(jnp.allclose(att, att_ref, atol=2e-3, rtol=2e-3))
    # masked tail of the short sequence must carry zero attention
    assert bool(jnp.all(att[1, 5:] == 0.0))

    # bf16 path: activations stream in native dtype (half the HBM traffic),
    # contractions accumulate in f32 on the MXU.
    rep16, att16 = attention_forward(
        inputs.astype(jnp.bfloat16), att_weights, lengths, batch_first=True)
    jax.block_until_ready((rep16, att16))
    rep_ref16, att_ref16 = _attention_reference(
        inputs.astype(jnp.bfloat16), att_weights, lengths)
    assert rep16.dtype == jnp.bfloat16 and att16.dtype == jnp.bfloat16
    assert bool(jnp.allclose(rep16.astype(jnp.float32), rep_ref16,
                             atol=3e-2, rtol=3e-2))
    assert bool(jnp.allclose(att16.astype(jnp.float32), att_ref16,
                             atol=3e-2, rtol=3e-2))
    assert bool(jnp.all(att16[1, 5:].astype(jnp.float32) == 0.0))

    print("KERNEL_OK")
</pallas_src>

<mosaic_0001>
module attributes {stable_mosaic.version = 11 : i64} {
  func.func @_attention_kernel(%arg0: i32, %arg1: memref<8x8x32xf32, #tpu.memory_space<vmem>>, %arg2: memref<1x1x32xf32, #tpu.memory_space<vmem>>, %arg3: memref<8x1x1xi32, #tpu.memory_space<vmem>>, %arg4: memref<8x1x32xf32, #tpu.memory_space<vmem>>, %arg5: memref<8x1x8xf32, #tpu.memory_space<vmem>>) attributes {dimension_semantics = [#tpu.dimension_semantics<parallel>], iteration_bounds = array<i64: 1>, scalar_prefetch = 0 : i64, scratch_operands = 0 : i64, tpu.core_type = #tpu.core_type<tc>, window_params = [{transform_indices = @transform_0, window_bounds = array<i64: 8, 8, 32>}, {pipeline_mode = #tpu.pipeline_mode<synchronous>, transform_indices = @transform_1, window_bounds = array<i64: 1, 1, 32>}, {transform_indices = @transform_2, window_bounds = array<i64: 8, 1, 1>}, {transform_indices = @transform_3, window_bounds = array<i64: 8, 1, 32>}, {transform_indices = @transform_4, window_bounds = array<i64: 8, 1, 8>}]} {
    %c0 = arith.constant 0 : index
    %c0_0 = arith.constant 0 : index
    %c0_1 = arith.constant 0 : index
    %0 = vector.load %arg1[%c0, %c0_0, %c0_1] : memref<8x8x32xf32, #tpu.memory_space<vmem>>, vector<8x8x32xf32>
    %c0_2 = arith.constant 0 : index
    %c0_3 = arith.constant 0 : index
    %c0_4 = arith.constant 0 : index
    %1 = vector.load %arg2[%c0_2, %c0_3, %c0_4] : memref<1x1x32xf32, #tpu.memory_space<vmem>>, vector<1x1x32xf32>
    %2 = vector.shape_cast %1 : vector<1x1x32xf32> to vector<1x1x32xf32>
    %3 = vector.broadcast %2 : vector<1x1x32xf32> to vector<8x1x32xf32>
    "tpu.trace_start"() <{level = 10 : i32, message = "bkh,blh->bkl"}> : () -> ()
    %cst = arith.constant dense<0.000000e+00> : vector<8x1x8xf32>
    %4 = tpu.matmul %3, %0, %cst {dimension_numbers = #tpu.dot_dimension_numbers<[2], [2], [1], [1], [0, 0, 0, 1, 1, 1], [0], [0]>} : vector<8x1x32xf32>, vector<8x8x32xf32>, vector<8x1x8xf32> -> vector<8x1x8xf32>
    "tpu.trace_stop"() : () -> ()
    %cst_5 = arith.constant 0.000000e+00 : f32
    %5 = vector.broadcast %cst_5 : f32 to vector<8x1x8xf32>
    %6 = arith.maximumf %4, %5 : vector<8x1x8xf32>
    %cst_6 = arith.constant dense<0xFF800000> : vector<8x1xf32>
    %7 = vector.multi_reduction <maximumf>, %6, %cst_6 [2] : vector<8x1x8xf32> to vector<8x1xf32>
    %8 = vector.shape_cast %7 : vector<8x1xf32> to vector<8x1x1xf32>
    %9 = vector.broadcast %8 : vector<8x1x1xf32> to vector<8x1x8xf32>
    %10 = arith.subf %6, %9 : vector<8x1x8xf32>
    %11 = math.exp %10 : vector<8x1x8xf32>
    %12 = tpu.iota {dimensions = array<i32: 2>} : vector<8x1x8xi32>
    %c0_7 = arith.constant 0 : index
    %c0_8 = arith.constant 0 : index
    %c0_9 = arith.constant 0 : index
    %13 = vector.load %arg3[%c0_7, %c0_8, %c0_9] : memref<8x1x1xi32, #tpu.memory_space<vmem>>, vector<8x1x1xi32>
    %14 = vector.broadcast %13 : vector<8x1x1xi32> to vector<8x1x8xi32>
    %15 = arith.cmpi slt, %12, %14 : vector<8x1x8xi32>
    %16 = arith.extui %15 : vector<8x1x8xi1> to vector<8x1x8xi32>
    %17 = arith.sitofp %16 : vector<8x1x8xi32> to vector<8x1x8xf32>
    %18 = arith.mulf %11, %17 : vector<8x1x8xf32>
    %cst_10 = arith.constant dense<0.000000e+00> : vector<8x1xf32>
    %19 = vector.multi_reduction <add>, %18, %cst_10 [2] : vector<8x1x8xf32> to vector<8x1xf32>
    %20 = vector.shape_cast %19 : vector<8x1xf32> to vector<8x1x1xf32>
    %21 = tpu.reciprocal %20 {approx = true} : vector<8x1x1xf32> -> vector<8x1x1xf32>
    %22 = vector.broadcast %21 : vector<8x1x1xf32> to vector<8x1x8xf32>
    %23 = arith.mulf %18, %22 : vector<8x1x8xf32>
    %c0_11 = arith.constant 0 : index
    %c0_12 = arith.constant 0 : index
    %c0_13 = arith.constant 0 : index
    %24 = vector.load %arg5[%c0_11, %c0_12, %c0_13] : memref<8x1x8xf32, #tpu.memory_space<vmem>>, vector<8x1x8xf32>
    tpu.vector_store %arg5[%c0_11, %c0_12, %c0_13], %23 {strides = array<i32>} : memref<8x1x8xf32, #tpu.memory_space<vmem>>, vector<8x1x8xf32>,
    "tpu.trace_start"() <{level = 10 : i32, message = "bkl,blh->bkh"}> : () -> ()
    %cst_14 = arith.constant dense<0.000000e+00> : vector<8x1x32xf32>
    %25 = tpu.matmul %23, %0, %cst_14 {dimension_numbers = #tpu.dot_dimension_numbers<[2], [1], [1], [2], [0, 0, 0, 1, 1, 2], [0], [0]>} : vector<8x1x8xf32>, vector<8x8x32xf32>, vector<8x1x32xf32> -> vector<8x1x32xf32>
    "tpu.trace_stop"() : () -> ()
    %c0_15 = arith.constant 0 : index
    %c0_16 = arith.constant 0 : index
    %c0_17 = arith.constant 0 : index
    %26 = vector.load %arg4[%c0_15, %c0_16, %c0_17] : memref<8x1x32xf32, #tpu.memory_space<vmem>>, vector<8x1x32xf32>
    tpu.vector_store %arg4[%c0_15, %c0_16, %c0_17], %25 {strides = array<i32>} : memref<8x1x32xf32, #tpu.memory_space<vmem>>, vector<8x1x32xf32>,
    return
  }
  func.func @transform_0(%arg0: i32) -> (i32, i32, i32) {
    %c0_i32 = arith.constant 0 : i32
    %c0_i32_0 = arith.constant 0 : i32
    %c0_i32_1 = arith.constant 0 : i32
    return %arg0, %c0_i32, %c0_i32_0 : i32, i32, i32
  }
  func.func @transform_1(%arg0: i32) -> (i32, i32, i32) {
    %c0_i32 = arith.constant 0 : i32
    %c0_i32_0 = arith.constant 0 : i32
    %c0_i32_1 = arith.constant 0 : i32
    %c0_i32_2 = arith.constant 0 : i32
    return %c0_i32, %c0_i32_0, %c0_i32_1 : i32, i32, i32
  }
  func.func @transform_2(%arg0: i32) -> (i32, i32, i32) {
    %c0_i32 = arith.constant 0 : i32
    %c0_i32_0 = arith.constant 0 : i32
    %c0_i32_1 = arith.constant 0 : i32
    return %arg0, %c0_i32, %c0_i32_0 : i32, i32, i32
  }
  func.func @transform_3(%arg0: i32) -> (i32, i32, i32) {
    %c0_i32 = arith.constant 0 : i32
    %c0_i32_0 = arith.constant 0 : i32
    %c0_i32_1 = arith.constant 0 : i32
    return %arg0, %c0_i32, %c0_i32_0 : i32, i32, i32
  }
  func.func @transform_4(%arg0: i32) -> (i32, i32, i32) {
    %c0_i32 = arith.constant 0 : i32
    %c0_i32_0 = arith.constant 0 : i32
    %c0_i32_1 = arith.constant 0 : i32
    return %arg0, %c0_i32, %c0_i32_0 : i32, i32, i32
  }
}

</mosaic_0001>

<llo_original>
// kernel: tpu_custom_call.1
$region0: #{tpu_custom_call.1}
  #allocation0 [shape = 'u32[]', space=smem, size = 0x4, offset = 0x4, fixed_abs, tag = 'smem constant byte address 0x4 - core index']
  #allocation1 [shape = 'u32[144,128]{1,0:T(1,128)}', space=vmem, size = 0x12000, scoped, tag = 'internal scratch']
  %s0 = inlined_call_operand.hbm [shape: f32[8,8,32], index: 0, kind: input, shape index: {}]
  %s1 = inlined_call_operand.vmem [shape: f32[1,1,32], index: 1, kind: input, shape index: {}]
  %s2 = inlined_call_operand.vmem [shape: s32[8,1,1], index: 2, kind: input, shape index: {}]
  %s3 = inlined_call_operand.hbm [shape: f32[8,1,32], index: 3, kind: output, shape index: {0}]
  %s4 = inlined_call_operand.hbm [shape: f32[8,1,8], index: 4, kind: output, shape index: {1}]
  %5 = xla_tuple %s3, %s4
  %s6 = sld [smem:[#allocation0]]
  $region34: #{tpu_custom_call.1} parent=0
    _
  %s8 = ssub.s32 1, %s6
  %s9 = scalar_select 0, %s8, %s6
  $region1: #{tpu_custom_call.1} parent=0
    #allocation2 [shape = 'u8[32768]{0}', space=vmem, size = 0x8000, scoped, tag = 'input window, operand 0, single buffered']
    #allocation3 [shape = 's32[1]{0}', space=sflag, size = 0x4, scoped, tag = 'scoped memory for tpu_custom_call.1']
    #allocation4 [shape = 's32[1]{0}', space=sflag, size = 0x4, scoped, tag = 'scoped memory for tpu_custom_call.1']
    #allocation5 [shape = 'u8[4096]{0}', space=vmem, size = 0x1000, scoped, tag = 'output window, operand 0, single buffered']
    #allocation6 [shape = 'u8[4096]{0}', space=vmem, size = 0x1000, scoped, tag = 'output window, operand 1, single buffered']
    #allocation7 [shape = 's32[1]{0}', space=sflag, size = 0x4, scoped, tag = 'scoped memory for tpu_custom_call.1']
    %10 = vsyncpa [#allocation3], 0
    %11 = vsyncpa [#allocation4], 0
    %12 = vsyncpa [#allocation7], 0
    // Predicated region
    $region2: #{tpu_custom_call.1} parent=1 // pred_check
      _
    $region3: #{tpu_custom_call.1} parent=1 // pred_check_branch
      %14 = sbr.rel (0) target = $region5
    $region4: #{tpu_custom_call.1} parent=1 // pred_region
      %s16 = ssub.s32 1024, 1024
      %17 = vsyncadd [#allocation3], %s16
      %s18 = sshll.u32 [#allocation2], 4
      %s19 = int_to_ptr.vmem [resolvable:$true] %s18
      %24 = dma.hbm_to_vmem [thread:$0]  %s0, 1024, %s19, [#allocation3], 128, 128, 8
    $region5: #{tpu_custom_call.1} parent=1 // pred_fallthru
      _
    // Predicated region
    $region6: #{tpu_custom_call.1} parent=1 // pred_check
      _
    $region7: #{tpu_custom_call.1} parent=1 // pred_check_branch
      %26 = sbr.rel (0) target = $region9
    $region8: #{tpu_custom_call.1} parent=1 // pred_region
      _
    $region9: #{tpu_custom_call.1} parent=1 // pred_fallthru
      _
    // Predicated region
    $region10: #{tpu_custom_call.1} parent=1 // pred_check
      _
    $region11: #{tpu_custom_call.1} parent=1 // pred_check_branch
      %28 = sbr.rel (0) target = $region13
    $region12: #{tpu_custom_call.1} parent=1 // pred_region
      _
    $region13: #{tpu_custom_call.1} parent=1 // pred_fallthru
      _
    // Predicated region
    $region14: #{tpu_custom_call.1} parent=1 // pred_check
      _
    $region15: #{tpu_custom_call.1} parent=1 // pred_check_branch
      %30 = sbr.rel (0) target = $region17
    $region16: #{tpu_custom_call.1} parent=1 // pred_region
      %31 = dma.done [#allocation3], 1024
    $region17: #{tpu_custom_call.1} parent=1 // pred_fallthru
      _
    %v32 = vld [vmem:[#allocation2] sm:$0xff]
    %v33 = vld [vmem:[#allocation2 + $0x8] sm:$0xff]
    %v34 = vld [vmem:[#allocation2 + $0x10] sm:$0xff]
    %v35 = vld [vmem:[#allocation2 + $0x18] sm:$0xff]
    %v36 = vld [vmem:[#allocation2 + $0x20] sm:$0xff]
    %v37 = vld [vmem:[#allocation2 + $0x28] sm:$0xff]
    %v38 = vld [vmem:[#allocation2 + $0x30] sm:$0xff]
    %v39 = vld [vmem:[#allocation2 + $0x38] sm:$0xff]
    %v40 = vld [vmem:[%s1] sm:$0x1]
    %vm41 = vcmask 261120
    %v43 = vsel %vm41, %v40, 0
    %v46 = vsel %vm41, %v32, 0
    %48 = vmatprep.subr.mxu0 0.0
    %49 = vmatpush1.xpose.msra.mxu0 0.0
    %50 = vmatprep.subr.mxu0 0.0
    %51 = vmatpush1.xpose.msra.mxu0 0.0
    %52 = vmatprep.subr.mxu0 0.0
    %53 = vmatpush1.xpose.msra.mxu0 0.0
    %54 = vmatprep.subr.mxu0 0.0
    %55 = vmatpush1.xpose.msra.mxu0 0.0
    %56 = vmatprep.subr.mxu0 0.0
    %57 = vmatpush1.xpose.msra.mxu0 0.0
    %58 = vmatprep.subr.mxu0 0.0
    %59 = vmatpush1.xpose.msra.mxu0 0.0
    %60 = vmatprep.subr.mxu0 0.0
    %61 = vmatpush1.xpose.msra.mxu0 0.0
    %62 = vmatprep.subr.mxu0 0.0
    %63 = vmatpush1.xpose.msra.mxu0 0.0
    %64 = vmatprep.subr.mxu0 0.0
    %65 = vmatpush1.xpose.msra.mxu0 0.0
    %66 = vmatprep.subr.mxu0 0.0
    %67 = vmatpush1.xpose.msra.mxu0 0.0
    %68 = vmatprep.subr.mxu0 0.0
    %69 = vmatpush1.xpose.msra.mxu0 0.0
    %70 = vmatprep.subr.mxu0 0.0
    %71 = vmatpush1.xpose.msra.mxu0 0.0
    %72 = vmatprep.subr.mxu0 0.0
    %73 = vmatpush1.xpose.msra.mxu0 0.0
    %74 = vmatprep.subr.mxu0 0.0
    %75 = vmatpush1.xpose.msra.mxu0 0.0
    %76 = vmatprep.subr.mxu0 0.0
    %77 = vmatpush1.xpose.msra.mxu0 0.0
    %78 = vmatprep.subr.mxu0 0.0
    %79 = vmatpush1.xpose.msra.mxu0 %v46
    %80 = vmatprep.subr.mxu0 0.0
    %81 = vmatpush2.xpose.msra.mxu0 0.0
    %82 = vmatprep.subr.mxu0 0.0
    %83 = vmatpush2.xpose.msra.mxu0 0.0
    %84 = vmatprep.subr.mxu0 0.0
    %85 = vmatpush2.xpose.msra.mxu0 0.0
    %86 = vmatprep.subr.mxu0 0.0
    %87 = vmatpush2.xpose.msra.mxu0 0.0
    %88 = vmatprep.subr.mxu0 0.0
    %89 = vmatpush2.xpose.msra.mxu0 0.0
    %90 = vmatprep.subr.mxu0 0.0
    %91 = vmatpush2.xpose.msra.mxu0 0.0
    %92 = vmatprep.subr.mxu0 0.0
    %93 = vmatpush2.xpose.msra.mxu0 0.0
    %94 = vmatprep.subr.mxu0 0.0
    %95 = vmatpush2.xpose.msra.mxu0 0.0
    %96 = vmatprep.subr.mxu0 0.0
    %97 = vmatpush2.xpose.msra.mxu0 0.0
    %98 = vmatprep.subr.mxu0 0.0
    %99 = vmatpush2.xpose.msra.mxu0 0.0
    %100 = vmatprep.subr.mxu0 0.0
    %101 = vmatpush2.xpose.msra.mxu0 0.0
    %102 = vmatprep.subr.mxu0 0.0
    %103 = vmatpush2.xpose.msra.mxu0 0.0
    %104 = vmatprep.subr.mxu0 0.0
    %105 = vmatpush2.xpose.msra.mxu0 0.0
    %106 = vmatprep.subr.mxu0 0.0
    %107 = vmatpush2.xpose.msra.mxu0 0.0
    %108 = vmatprep.subr.mxu0 0.0
    %109 = vmatpush2.xpose.msra.mxu0 0.0
    %110 = vmatprep.subr.mxu0 0.0
    %111 = vmatpush2.xpose.msra.mxu0 0.0
    %112 = vmatprep.mubr.f32.mxu0 0.0
    %113 = vmatmul.mubr.f32.gmra.mxu0 %v43
    %v114 = vpop.f32.mrf.mxu0
    %v115 = vadd.f32 0.0, %v114
    %v116 = vpop.f32.mrf.mxu0
    %117 = vdwg.mxu0
    %v119 = vsel %vm41, %v33, 0
    %121 = vmatprep.subr.mxu0 0.0
    %122 = vmatpush1.xpose.msra.mxu0 0.0
    %123 = vmatprep.subr.mxu0 0.0
    %124 = vmatpush1.xpose.msra.mxu0 0.0
    %125 = vmatprep.subr.mxu0 0.0
    %126 = vmatpush1.xpose.msra.mxu0 0.0
    %127 = vmatprep.subr.mxu0 0.0
    %128 = vmatpush1.xpose.msra.mxu0 0.0
    %129 = vmatprep.subr.mxu0 0.0
    %130 = vmatpush1.xpose.msra.mxu0 0.0
    %131 = vmatprep.subr.mxu0 0.0
    %132 = vmatpush1.xpose.msra.mxu0 0.0
    %133 = vmatprep.subr.mxu0 0.0
    %134 = vmatpush1.xpose.msra.mxu0 0.0
    %135 = vmatprep.subr.mxu0 0.0
    %136 = vmatpush1.xpose.msra.mxu0 0.0
    %137 = vmatprep.subr.mxu0 0.0
    %138 = vmatpush1.xpose.msra.mxu0 0.0
    %139 = vmatprep.subr.mxu0 0.0
    %140 = vmatpush1.xpose.msra.mxu0 0.0
    %141 = vmatprep.subr.mxu0 0.0
    %142 = vmatpush1.xpose.msra.mxu0 0.0
    %143 = vmatprep.subr.mxu0 0.0
    %144 = vmatpush1.xpose.msra.mxu0 0.0
    %145 = vmatprep.subr.mxu0 0.0
    %146 = vmatpush1.xpose.msra.mxu0 0.0
    %147 = vmatprep.subr.mxu0 0.0
    %148 = vmatpush1.xpose.msra.mxu0 0.0
    %149 = vmatprep.subr.mxu0 0.0
    %150 = vmatpush1.xpose.msra.mxu0 0.0
    %151 = vmatprep.subr.mxu0 0.0
    %152 = vmatpush1.xpose.msra.mxu0 %v119
    %153 = vmatprep.subr.mxu0 0.0
    %154 = vmatpush2.xpose.msra.mxu0 0.0
    %155 = vmatprep.subr.mxu0 0.0
    %156 = vmatpush2.xpose.msra.mxu0 0.0
    %157 = vmatprep.subr.mxu0 0.0
    %158 = vmatpush2.xpose.msra.mxu0 0.0
    %159 = vmatprep.subr.mxu0 0.0
    %160 = vmatpush2.xpose.msra.mxu0 0.0
    %161 = vmatprep.subr.mxu0 0.0
    %162 = vmatpush2.xpose.msra.mxu0 0.0
    %163 = vmatprep.subr.mxu0 0.0
    %164 = vmatpush2.xpose.msra.mxu0 0.0
    %165 = vmatprep.subr.mxu0 0.0
    %166 = vmatpush2.xpose.msra.mxu0 0.0
    %167 = vmatprep.subr.mxu0 0.0
    %168 = vmatpush2.xpose.msra.mxu0 0.0
    %169 = vmatprep.subr.mxu0 0.0
    %170 = vmatpush2.xpose.msra.mxu0 0.0
    %171 = vmatprep.subr.mxu0 0.0
    %172 = vmatpush2.xpose.msra.mxu0 0.0
    %173 = vmatprep.subr.mxu0 0.0
    %174 = vmatpush2.xpose.msra.mxu0 0.0
    %175 = vmatprep.subr.mxu0 0.0
    %176 = vmatpush2.xpose.msra.mxu0 0.0
    %177 = vmatprep.subr.mxu0 0.0
    %178 = vmatpush2.xpose.msra.mxu0 0.0
    %179 = vmatprep.subr.mxu0 0.0
    %180 = vmatpush2.xpose.msra.mxu0 0.0
    %181 = vmatprep.subr.mxu0 0.0
    %182 = vmatpush2.xpose.msra.mxu0 0.0
    %183 = vmatprep.subr.mxu0 0.0
    %184 = vmatpush2.xpose.msra.mxu0 0.0
    %185 = vmatprep.mubr.f32.mxu0 0.0
    %186 = vmatmul.mubr.f32.gmra.mxu0 %v43
    %v187 = vpop.f32.mrf.mxu0
    %v188 = vadd.f32 0.0, %v187
    %v189 = vpop.f32.mrf.mxu0
    %190 = vdwg.mxu0
    %v192 = vsel %vm41, %v34, 0
    %194 = vmatprep.subr.mxu0 0.0
    %195 = vmatpush1.xpose.msra.mxu0 0.0
    %196 = vmatprep.subr.mxu0 0.0
    %197 = vmatpush1.xpose.msra.mxu0 0.0
    %198 = vmatprep.subr.mxu0 0.0
    %199 = vmatpush1.xpose.msra.mxu0 0.0
    %200 = vmatprep.subr.mxu0 0.0
    %201 = vmatpush1.xpose.msra.mxu0 0.0
    %202 = vmatprep.subr.mxu0 0.0
    %203 = vmatpush1.xpose.msra.mxu0 0.0
    %204 = vmatprep.subr.mxu0 0.0
    %205 = vmatpush1.xpose.msra.mxu0 0.0
    %206 = vmatprep.subr.mxu0 0.0
    %207 = vmatpush1.xpose.msra.mxu0 0.0
    %208 = vmatprep.subr.mxu0 0.0
    %209 = vmatpush1.xpose.msra.mxu0 0.0
    %210 = vmatprep.subr.mxu0 0.0
    %211 = vmatpush1.xpose.msra.mxu0 0.0
    %212 = vmatprep.subr.mxu0 0.0
    %213 = vmatpush1.xpose.msra.mxu0 0.0
    %214 = vmatprep.subr.mxu0 0.0
    %215 = vmatpush1.xpose.msra.mxu0 0.0
    %216 = vmatprep.subr.mxu0 0.0
    %217 = vmatpush1.xpose.msra.mxu0 0.0
    %218 = vmatprep.subr.mxu0 0.0
    %219 = vmatpush1.xpose.msra.mxu0 0.0
    %220 = vmatprep.subr.mxu0 0.0
    %221 = vmatpush1.xpose.msra.mxu0 0.0
    %222 = vmatprep.subr.mxu0 0.0
    %223 = vmatpush1.xpose.msra.mxu0 0.0
    %224 = vmatprep.subr.mxu0 0.0
    %225 = vmatpush1.xpose.msra.mxu0 %v192
    %226 = vmatprep.subr.mxu0 0.0
    %227 = vmatpush2.xpose.msra.mxu0 0.0
    %228 = vmatprep.subr.mxu0 0.0
    %229 = vmatpush2.xpose.msra.mxu0 0.0
    %230 = vmatprep.subr.mxu0 0.0
    %231 = vmatpush2.xpose.msra.mxu0 0.0
    %232 = vmatprep.subr.mxu0 0.0
    %233 = vmatpush2.xpose.msra.mxu0 0.0
    %234 = vmatprep.subr.mxu0 0.0
    %235 = vmatpush2.xpose.msra.mxu0 0.0
    %236 = vmatprep.subr.mxu0 0.0
    %237 = vmatpush2.xpose.msra.mxu0 0.0
    %238 = vmatprep.subr.mxu0 0.0
    %239 = vmatpush2.xpose.msra.mxu0 0.0
    %240 = vmatprep.subr.mxu0 0.0
    %241 = vmatpush2.xpose.msra.mxu0 0.0
    %242 = vmatprep.subr.mxu0 0.0
    %243 = vmatpush2.xpose.msra.mxu0 0.0
    %244 = vmatprep.subr.mxu0 0.0
    %245 = vmatpush2.xpose.msra.mxu0 0.0
    %246 = vmatprep.subr.mxu0 0.0
    %247 = vmatpush2.xpose.msra.mxu0 0.0
    %248 = vmatprep.subr.mxu0 0.0
    %249 = vmatpush2.xpose.msra.mxu0 0.0
    %250 = vmatprep.subr.mxu0 0.0
    %251 = vmatpush2.xpose.msra.mxu0 0.0
    %252 = vmatprep.subr.mxu0 0.0
    %253 = vmatpush2.xpose.msra.mxu0 0.0
    %254 = vmatprep.subr.mxu0 0.0
    %255 = vmatpush2.xpose.msra.mxu0 0.0
    %256 = vmatprep.subr.mxu0 0.0
    %257 = vmatpush2.xpose.msra.mxu0 0.0
    %258 = vmatprep.mubr.f32.mxu0 0.0
    %259 = vmatmul.mubr.f32.gmra.mxu0 %v43
    %v260 = vpop.f32.mrf.mxu0
    %v261 = vadd.f32 0.0, %v260
    %v262 = vpop.f32.mrf.mxu0
    %263 = vdwg.mxu0
    %v265 = vsel %vm41, %v35, 0
    %267 = vmatprep.subr.mxu0 0.0
    %268 = vmatpush1.xpose.msra.mxu0 0.0
    %269 = vmatprep.subr.mxu0 0.0
    %270 = vmatpush1.xpose.msra.mxu0 0.0
    %271 = vmatprep.subr.mxu0 0.0
    %272 = vmatpush1.xpose.msra.mxu0 0.0
    %273 = vmatprep.subr.mxu0 0.0
    %274 = vmatpush1.xpose.msra.mxu0 0.0
    %275 = vmatprep.subr.mxu0 0.0
    %276 = vmatpush1.xpose.msra.mxu0 0.0
    %277 = vmatprep.subr.mxu0 0.0
    %278 = vmatpush1.xpose.msra.mxu0 0.0
    %279 = vmatprep.subr.mxu0 0.0
    %280 = vmatpush1.xpose.msra.mxu0 0.0
    %281 = vmatprep.subr.mxu0 0.0
    %282 = vmatpush1.xpose.msra.mxu0 0.0
    %283 = vmatprep.subr.mxu0 0.0
    %284 = vmatpush1.xpose.msra.mxu0 0.0
    %285 = vmatprep.subr.mxu0 0.0
    %286 = vmatpush1.xpose.msra.mxu0 0.0
    %287 = vmatprep.subr.mxu0 0.0
    %288 = vmatpush1.xpose.msra.mxu0 0.0
    %289 = vmatprep.subr.mxu0 0.0
    %290 = vmatpush1.xpose.msra.mxu0 0.0
    %291 = vmatprep.subr.mxu0 0.0
    %292 = vmatpush1.xpose.msra.mxu0 0.0
    %293 = vmatprep.subr.mxu0 0.0
    %294 = vmatpush1.xpose.msra.mxu0 0.0
    %295 = vmatprep.subr.mxu0 0.0
    %296 = vmatpush1.xpose.msra.mxu0 0.0
    %297 = vmatprep.subr.mxu0 0.0
    %298 = vmatpush1.xpose.msra.mxu0 %v265
    %299 = vmatprep.subr.mxu0 0.0
    %300 = vmatpush2.xpose.msra.mxu0 0.0
    %301 = vmatprep.subr.mxu0 0.0
    %302 = vmatpush2.xpose.msra.mxu0 0.0
    %303 = vmatprep.subr.mxu0 0.0
    %304 = vmatpush2.xpose.msra.mxu0 0.0
    %305 = vmatprep.subr.mxu0 0.0
    %306 = vmatpush2.xpose.msra.mxu0 0.0
    %307 = vmatprep.subr.mxu0 0.0
    %308 = vmatpush2.xpose.msra.mxu0 0.0
    %309 = vmatprep.subr.mxu0 0.0
    %310 = vmatpush2.xpose.msra.mxu0 0.0
    %311 = vmatprep.subr.mxu0 0.0
    %312 = vmatpush2.xpose.msra.mxu0 0.0
    %313 = vmatprep.subr.mxu0 0.0
    %314 = vmatpush2.xpose.msra.mxu0 0.0
    %315 = vmatprep.subr.mxu0 0.0
    %316 = vmatpush2.xpose.msra.mxu0 0.0
    %317 = vmatprep.subr.mxu0 0.0
    %318 = vmatpush2.xpose.msra.mxu0 0.0
    %319 = vmatprep.subr.mxu0 0.0
    %320 = vmatpush2.xpose.msra.mxu0 0.0
    %321 = vmatprep.subr.mxu0 0.0
    %322 = vmatpush2.xpose.msra.mxu0 0.0
    %323 = vmatprep.subr.mxu0 0.0
    %324 = vmatpush2.xpose.msra.mxu0 0.0
    %325 = vmatprep.subr.mxu0 0.0
    %326 = vmatpush2.xpose.msra.mxu0 0.0
    %327 = vmatprep.subr.mxu0 0.0
    %328 = vmatpush2.xpose.msra.mxu0 0.0
    %329 = vmatprep.subr.mxu0 0.0
    %330 = vmatpush2.xpose.msra.mxu0 0.0
    %331 = vmatprep.mubr.f32.mxu0 0.0
    %332 = vmatmul.mubr.f32.gmra.mxu0 %v43
    %v333 = vpop.f32.mrf.mxu0
    %v334 = vadd.f32 0.0, %v333
    %v335 = vpop.f32.mrf.mxu0
    %336 = vdwg.mxu0
    %v338 = vsel %vm41, %v36, 0
    %340 = vmatprep.subr.mxu0 0.0
    %341 = vmatpush1.xpose.msra.mxu0 0.0
    %342 = vmatprep.subr.mxu0 0.0
    %343 = vmatpush1.xpose.msra.mxu0 0.0
    %344 = vmatprep.subr.mxu0 0.0
    %345 = vmatpush1.xpose.msra.mxu0 0.0
    %346 = vmatprep.subr.mxu0 0.0
    %347 = vmatpush1.xpose.msra.mxu0 0.0
    %348 = vmatprep.subr.mxu0 0.0
    %349 = vmatpush1.xpose.msra.mxu0 0.0
    %350 = vmatprep.subr.mxu0 0.0
    %351 = vmatpush1.xpose.msra.mxu0 0.0
    %352 = vmatprep.subr.mxu0 0.0
    %353 = vmatpush1.xpose.msra.mxu0 0.0
    %354 = vmatprep.subr.mxu0 0.0
    %355 = vmatpush1.xpose.msra.mxu0 0.0
    %356 = vmatprep.subr.mxu0 0.0
    %357 = vmatpush1.xpose.msra.mxu0 0.0
    %358 = vmatprep.subr.mxu0 0.0
    %359 = vmatpush1.xpose.msra.mxu0 0.0
    %360 = vmatprep.subr.mxu0 0.0
    %361 = vmatpush1.xpose.msra.mxu0 0.0
    %362 = vmatprep.subr.mxu0 0.0
    %363 = vmatpush1.xpose.msra.mxu0 0.0
    %364 = vmatprep.subr.mxu0 0.0
    %365 = vmatpush1.xpose.msra.mxu0 0.0
    %366 = vmatprep.subr.mxu0 0.0
    %367 = vmatpush1.xpose.msra.mxu0 0.0
    %368 = vmatprep.subr.mxu0 0.0
    %369 = vmatpush1.xpose.msra.mxu0 0.0
    %370 = vmatprep.subr.mxu0 0.0
    %371 = vmatpush1.xpose.msra.mxu0 %v338
    %372 = vmatprep.subr.mxu0 0.0
    %373 = vmatpush2.xpose.msra.mxu0 0.0
    %374 = vmatprep.subr.mxu0 0.0
    %375 = vmatpush2.xpose.msra.mxu0 0.0
    %376 = vmatprep.subr.mxu0 0.0
    %377 = vmatpush2.xpose.msra.mxu0 0.0
    %378 = vmatprep.subr.mxu0 0.0
    %379 = vmatpush2.xpose.msra.mxu0 0.0
    %380 = vmatprep.subr.mxu0 0.0
    %381 = vmatpush2.xpose.msra.mxu0 0.0
    %382 = vmatprep.subr.mxu0 0.0
    %383 = vmatpush2.xpose.msra.mxu0 0.0
    %384 = vmatprep.subr.mxu0 0.0
    %385 = vmatpush2.xpose.msra.mxu0 0.0
    %386 = vmatprep.subr.mxu0 0.0
    %387 = vmatpush2.xpose.msra.mxu0 0.0
    %388 = vmatprep.subr.mxu0 0.0
    %389 = vmatpush2.xpose.msra.mxu0 0.0
    %390 = vmatprep.subr.mxu0 0.0
    %391 = vmatpush2.xpose.msra.mxu0 0.0
    %392 = vmatprep.subr.mxu0 0.0
    %393 = vmatpush2.xpose.msra.mxu0 0.0
    %394 = vmatprep.subr.mxu0 0.0
    %395 = vmatpush2.xpose.msra.mxu0 0.0
    %396 = vmatprep.subr.mxu0 0.0
    %397 = vmatpush2.xpose.msra.mxu0 0.0
    %398 = vmatprep.subr.mxu0 0.0
    %399 = vmatpush2.xpose.msra.mxu0 0.0
    %400 = vmatprep.subr.mxu0 0.0
    %401 = vmatpush2.xpose.msra.mxu0 0.0
    %402 = vmatprep.subr.mxu0 0.0
    %403 = vmatpush2.xpose.msra.mxu0 0.0
    %404 = vmatprep.mubr.f32.mxu0 0.0
    %405 = vmatmul.mubr.f32.gmra.mxu0 %v43
    %v406 = vpop.f32.mrf.mxu0
    %v407 = vadd.f32 0.0, %v406
    %v408 = vpop.f32.mrf.mxu0
    %409 = vdwg.mxu0
    %v411 = vsel %vm41, %v37, 0
    %413 = vmatprep.subr.mxu0 0.0
    %414 = vmatpush1.xpose.msra.mxu0 0.0
    %415 = vmatprep.subr.mxu0 0.0
    %416 = vmatpush1.xpose.msra.mxu0 0.0
    %417 = vmatprep.subr.mxu0 0.0
    %418 = vmatpush1.xpose.msra.mxu0 0.0
    %419 = vmatprep.subr.mxu0 0.0
    %420 = vmatpush1.xpose.msra.mxu0 0.0
    %421 = vmatprep.subr.mxu0 0.0
    %422 = vmatpush1.xpose.msra.mxu0 0.0
    %423 = vmatprep.subr.mxu0 0.0
    %424 = vmatpush1.xpose.msra.mxu0 0.0
    %425 = vmatprep.subr.mxu0 0.0
    %426 = vmatpush1.xpose.msra.mxu0 0.0
    %427 = vmatprep.subr.mxu0 0.0
    %428 = vmatpush1.xpose.msra.mxu0 0.0
    %429 = vmatprep.subr.mxu0 0.0
    %430 = vmatpush1.xpose.msra.mxu0 0.0
    %431 = vmatprep.subr.mxu0 0.0
    %432 = vmatpush1.xpose.msra.mxu0 0.0
    %433 = vmatprep.subr.mxu0 0.0
    %434 = vmatpush1.xpose.msra.mxu0 0.0
    %435 = vmatprep.subr.mxu0 0.0
    %436 = vmatpush1.xpose.msra.mxu0 0.0
    %437 = vmatprep.subr.mxu0 0.0
    %438 = vmatpush1.xpose.msra.mxu0 0.0
    %439 = vmatprep.subr.mxu0 0.0
    %440 = vmatpush1.xpose.msra.mxu0 0.0
    %441 = vmatprep.subr.mxu0 0.0
    %442 = vmatpush1.xpose.msra.mxu0 0.0
    %443 = vmatprep.subr.mxu0 0.0
    %444 = vmatpush1.xpose.msra.mxu0 %v411
    %445 = vmatprep.subr.mxu0 0.0
    %446 = vmatpush2.xpose.msra.mxu0 0.0
    %447 = vmatprep.subr.mxu0 0.0
    %448 = vmatpush2.xpose.msra.mxu0 0.0
    %449 = vmatprep.subr.mxu0 0.0
    %450 = vmatpush2.xpose.msra.mxu0 0.0
    %451 = vmatprep.subr.mxu0 0.0
    %452 = vmatpush2.xpose.msra.mxu0 0.0
    %453 = vmatprep.subr.mxu0 0.0
    %454 = vmatpush2.xpose.msra.mxu0 0.0
    %455 = vmatprep.subr.mxu0 0.0
    %456 = vmatpush2.xpose.msra.mxu0 0.0
    %457 = vmatprep.subr.mxu0 0.0
    %458 = vmatpush2.xpose.msra.mxu0 0.0
    %459 = vmatprep.subr.mxu0 0.0
    %460 = vmatpush2.xpose.msra.mxu0 0.0
    %461 = vmatprep.subr.mxu0 0.0
    %462 = vmatpush2.xpose.msra.mxu0 0.0
    %463 = vmatprep.subr.mxu0 0.0
    %464 = vmatpush2.xpose.msra.mxu0 0.0
    %465 = vmatprep.subr.mxu0 0.0
    %466 = vmatpush2.xpose.msra.mxu0 0.0
    %467 = vmatprep.subr.mxu0 0.0
    %468 = vmatpush2.xpose.msra.mxu0 0.0
    %469 = vmatprep.subr.mxu0 0.0
    %470 = vmatpush2.xpose.msra.mxu0 0.0
    %471 = vmatprep.subr.mxu0 0.0
    %472 = vmatpush2.xpose.msra.mxu0 0.0
    %473 = vmatprep.subr.mxu0 0.0
    %474 = vmatpush2.xpose.msra.mxu0 0.0
    %475 = vmatprep.subr.mxu0 0.0
    %476 = vmatpush2.xpose.msra.mxu0 0.0
    %477 = vmatprep.mubr.f32.mxu0 0.0
    %478 = vmatmul.mubr.f32.gmra.mxu0 %v43
    %v479 = vpop.f32.mrf.mxu0
    %v480 = vadd.f32 0.0, %v479
    %v481 = vpop.f32.mrf.mxu0
    %482 = vdwg.mxu0
    %v484 = vsel %vm41, %v38, 0
    %486 = vmatprep.subr.mxu0 0.0
    %487 = vmatpush1.xpose.msra.mxu0 0.0
    %488 = vmatprep.subr.mxu0 0.0
    %489 = vmatpush1.xpose.msra.mxu0 0.0
    %490 = vmatprep.subr.mxu0 0.0
    %491 = vmatpush1.xpose.msra.mxu0 0.0
    %492 = vmatprep.subr.mxu0 0.0
    %493 = vmatpush1.xpose.msra.mxu0 0.0
    %494 = vmatprep.subr.mxu0 0.0
    %495 = vmatpush1.xpose.msra.mxu0 0.0
    %496 = vmatprep.subr.mxu0 0.0
    %497 = vmatpush1.xpose.msra.mxu0 0.0
    %498 = vmatprep.subr.mxu0 0.0
    %499 = vmatpush1.xpose.msra.mxu0 0.0
    %500 = vmatprep.subr.mxu0 0.0
    %501 = vmatpush1.xpose.msra.mxu0 0.0
    %502 = vmatprep.subr.mxu0 0.0
    %503 = vmatpush1.xpose.msra.mxu0 0.0
    %504 = vmatprep.subr.mxu0 0.0
    %505 = vmatpush1.xpose.msra.mxu0 0.0
    %506 = vmatprep.subr.mxu0 0.0
    %507 = vmatpush1.xpose.msra.mxu0 0.0
    %508 = vmatprep.subr.mxu0 0.0
    %509 = vmatpush1.xpose.msra.mxu0 0.0
    %510 = vmatprep.subr.mxu0 0.0
    %511 = vmatpush1.xpose.msra.mxu0 0.0
    %512 = vmatprep.subr.mxu0 0.0
    %513 = vmatpush1.xpose.msra.mxu0 0.0
    %514 = vmatprep.subr.mxu0 0.0
    %515 = vmatpush1.xpose.msra.mxu0 0.0
    %516 = vmatprep.subr.mxu0 0.0
    %517 = vmatpush1.xpose.msra.mxu0 %v484
    %518 = vmatprep.subr.mxu0 0.0
    %519 = vmatpush2.xpose.msra.mxu0 0.0
    %520 = vmatprep.subr.mxu0 0.0
    %521 = vmatpush2.xpose.msra.mxu0 0.0
    %522 = vmatprep.subr.mxu0 0.0
    %523 = vmatpush2.xpose.msra.mxu0 0.0
    %524 = vmatprep.subr.mxu0 0.0
    %525 = vmatpush2.xpose.msra.mxu0 0.0
    %526 = vmatprep.subr.mxu0 0.0
    %527 = vmatpush2.xpose.msra.mxu0 0.0
    %528 = vmatprep.subr.mxu0 0.0
    %529 = vmatpush2.xpose.msra.mxu0 0.0
    %530 = vmatprep.subr.mxu0 0.0
    %531 = vmatpush2.xpose.msra.mxu0 0.0
    %532 = vmatprep.subr.mxu0 0.0
    %533 = vmatpush2.xpose.msra.mxu0 0.0
    %534 = vmatprep.subr.mxu0 0.0
    %535 = vmatpush2.xpose.msra.mxu0 0.0
    %536 = vmatprep.subr.mxu0 0.0
    %537 = vmatpush2.xpose.msra.mxu0 0.0
    %538 = vmatprep.subr.mxu0 0.0
    %539 = vmatpush2.xpose.msra.mxu0 0.0
    %540 = vmatprep.subr.mxu0 0.0
    %541 = vmatpush2.xpose.msra.mxu0 0.0
    %542 = vmatprep.subr.mxu0 0.0
    %543 = vmatpush2.xpose.msra.mxu0 0.0
    %544 = vmatprep.subr.mxu0 0.0
    %545 = vmatpush2.xpose.msra.mxu0 0.0
    %546 = vmatprep.subr.mxu0 0.0
    %547 = vmatpush2.xpose.msra.mxu0 0.0
    %548 = vmatprep.subr.mxu0 0.0
    %549 = vmatpush2.xpose.msra.mxu0 0.0
    %550 = vmatprep.mubr.f32.mxu0 0.0
    %551 = vmatmul.mubr.f32.gmra.mxu0 %v43
    %v552 = vpop.f32.mrf.mxu0
    %v553 = vadd.f32 0.0, %v552
    %v554 = vpop.f32.mrf.mxu0
    %555 = vdwg.mxu0
    %v557 = vsel %vm41, %v39, 0
    %559 = vmatprep.subr.mxu0 0.0
    %560 = vmatpush1.xpose.msra.mxu0 0.0
    %561 = vmatprep.subr.mxu0 0.0
    %562 = vmatpush1.xpose.msra.mxu0 0.0
    %563 = vmatprep.subr.mxu0 0.0
    %564 = vmatpush1.xpose.msra.mxu0 0.0
    %565 = vmatprep.subr.mxu0 0.0
    %566 = vmatpush1.xpose.msra.mxu0 0.0
    %567 = vmatprep.subr.mxu0 0.0
    %568 = vmatpush1.xpose.msra.mxu0 0.0
    %569 = vmatprep.subr.mxu0 0.0
    %570 = vmatpush1.xpose.msra.mxu0 0.0
    %571 = vmatprep.subr.mxu0 0.0
    %572 = vmatpush1.xpose.msra.mxu0 0.0
    %573 = vmatprep.subr.mxu0 0.0
    %574 = vmatpush1.xpose.msra.mxu0 0.0
    %575 = vmatprep.subr.mxu0 0.0
    %576 = vmatpush1.xpose.msra.mxu0 0.0
    %577 = vmatprep.subr.mxu0 0.0
    %578 = vmatpush1.xpose.msra.mxu0 0.0
    %579 = vmatprep.subr.mxu0 0.0
    %580 = vmatpush1.xpose.msra.mxu0 0.0
    %581 = vmatprep.subr.mxu0 0.0
    %582 = vmatpush1.xpose.msra.mxu0 0.0
    %583 = vmatprep.subr.mxu0 0.0
    %584 = vmatpush1.xpose.msra.mxu0 0.0
    %585 = vmatprep.subr.mxu0 0.0
    %586 = vmatpush1.xpose.msra.mxu0 0.0
    %587 = vmatprep.subr.mxu0 0.0
    %588 = vmatpush1.xpose.msra.mxu0 0.0
    %589 = vmatprep.subr.mxu0 0.0
    %590 = vmatpush1.xpose.msra.mxu0 %v557
    %591 = vmatprep.subr.mxu0 0.0
    %592 = vmatpush2.xpose.msra.mxu0 0.0
    %593 = vmatprep.subr.mxu0 0.0
    %594 = vmatpush2.xpose.msra.mxu0 0.0
    %595 = vmatprep.subr.mxu0 0.0
    %596 = vmatpush2.xpose.msra.mxu0 0.0
    %597 = vmatprep.subr.mxu0 0.0
    %598 = vmatpush2.xpose.msra.mxu0 0.0
    %599 = vmatprep.subr.mxu0 0.0
    %600 = vmatpush2.xpose.msra.mxu0 0.0
    %601 = vmatprep.subr.mxu0 0.0
    %602 = vmatpush2.xpose.msra.mxu0 0.0
    %603 = vmatprep.subr.mxu0 0.0
    %604 = vmatpush2.xpose.msra.mxu0 0.0
    %605 = vmatprep.subr.mxu0 0.0
    %606 = vmatpush2.xpose.msra.mxu0 0.0
    %607 = vmatprep.subr.mxu0 0.0
    %608 = vmatpush2.xpose.msra.mxu0 0.0
    %609 = vmatprep.subr.mxu0 0.0
    %610 = vmatpush2.xpose.msra.mxu0 0.0
    %611 = vmatprep.subr.mxu0 0.0
    %612 = vmatpush2.xpose.msra.mxu0 0.0
    %613 = vmatprep.subr.mxu0 0.0
    %614 = vmatpush2.xpose.msra.mxu0 0.0
    %615 = vmatprep.subr.mxu0 0.0
    %616 = vmatpush2.xpose.msra.mxu0 0.0
    %617 = vmatprep.subr.mxu0 0.0
    %618 = vmatpush2.xpose.msra.mxu0 0.0
    %619 = vmatprep.subr.mxu0 0.0
    %620 = vmatpush2.xpose.msra.mxu0 0.0
    %621 = vmatprep.subr.mxu0 0.0
    %622 = vmatpush2.xpose.msra.mxu0 0.0
    %623 = vmatprep.mubr.f32.mxu0 0.0
    %624 = vmatmul.mubr.f32.gmra.mxu0 %v43
    %v625 = vpop.f32.mrf.mxu0
    %v626 = vadd.f32 0.0, %v625
    %v627 = vpop.f32.mrf.mxu0
    %628 = vdwg.mxu0
    %v629 = vmax.f32 %v115, 0.0
    %v630 = vmax.f32 %v188, 0.0
    %v631 = vmax.f32 %v261, 0.0
    %v632 = vmax.f32 %v334, 0.0
    %v633 = vmax.f32 %v407, 0.0
    %v634 = vmax.f32 %v480, 0.0
    %v635 = vmax.f32 %v553, 0.0
    %v636 = vmax.f32 %v626, 0.0
    %vm637 = vcmask 57344
    %v638 = vsel %vm637, %v629, -inf
    %639 = vmax.xlane.f32.xlu0 %v638
    %v640 = vpop.xlane.xlu0 %639
    %v641 = vsel %vm637, %v630, -inf
    %642 = vmax.xlane.f32.xlu0 %v641
    %v643 = vpop.xlane.xlu0 %642
    %v644 = vsel %vm637, %v631, -inf
    %645 = vmax.xlane.f32.xlu0 %v644
    %v646 = vpop.xlane.xlu0 %645
    %v647 = vsel %vm637, %v632, -inf
    %648 = vmax.xlane.f32.xlu0 %v647
    %v649 = vpop.xlane.xlu0 %648
    %v650 = vsel %vm637, %v633, -inf
    %651 = vmax.xlane.f32.xlu0 %v650
    %v652 = vpop.xlane.xlu0 %651
    %v653 = vsel %vm637, %v634, -inf
    %654 = vmax.xlane.f32.xlu0 %v653
    %v655 = vpop.xlane.xlu0 %654
    %v656 = vsel %vm637, %v635, -inf
    %657 = vmax.xlane.f32.xlu0 %v656
    %v658 = vpop.xlane.xlu0 %657
    %v659 = vsel %vm637, %v636, -inf
    %660 = vmax.xlane.f32.xlu0 %v659
    %v661 = vpop.xlane.xlu0 %660
    %v662 = vsub.f32 %v629, %v640
    %v663 = vsub.f32 %v630, %v643
    %v664 = vsub.f32 %v631, %v646
    %v665 = vsub.f32 %v632, %v649
    %v666 = vsub.f32 %v633, %v652
    %v667 = vsub.f32 %v634, %v655
    %v668 = vsub.f32 %v635, %v658
    %v669 = vsub.f32 %v636, %v661
    %v670 = vmul.f32 %v662, 1.442695
    %v671 = vpow.pop %v670
    %v672 = vmul.f32 %v663, 1.442695
    %v673 = vpow.pop %v672
    %v674 = vmul.f32 %v664, 1.442695
    %v675 = vpow.pop %v674
    %v676 = vmul.f32 %v665, 1.442695
    %v677 = vpow.pop %v676
    %v678 = vmul.f32 %v666, 1.442695
    %v679 = vpow.pop %v678
    %v680 = vmul.f32 %v667, 1.442695
    %v681 = vpow.pop %v680
    %v682 = vmul.f32 %v668, 1.442695
    %v683 = vpow.pop %v682
    %v684 = vmul.f32 %v669, 1.442695
    %v685 = vpow.pop %v684
    %v686 = vlaneseq
    %v687 = vand.u32 %v686, 127
    %v688 = vld [vmem:[%s2] sm:$0x1]
    %v689 = vld [vmem:[%s2 + $0x1] sm:$0x1]
    %v690 = vld [vmem:[%s2 + $0x2] sm:$0x1]
    %v691 = vld [vmem:[%s2 + $0x3] sm:$0x1]
    %v692 = vld [vmem:[%s2 + $0x4] sm:$0x1]
    %v693 = vld [vmem:[%s2 + $0x5] sm:$0x1]
    %v694 = vld [vmem:[%s2 + $0x6] sm:$0x1]
    %v695 = vld [vmem:[%s2 + $0x7] sm:$0x1]
    %696 = vset.pattern.permute.xlu0 0
    %697 = vperm.xlu0 %696, %v688
    %v698 = vpop.permute.xlu0 %697
    %v699 = vlaneseq
    %v700 = vshrl.u32 %v699, 7
    %v701 = vsub.s32 0, %v700
    %v702 = vrot.slane %v698, %v701
    %703 = vset.pattern.permute.xlu0 0
    %704 = vperm.xlu0 %703, %v689
    %v705 = vpop.permute.xlu0 %704
    %v706 = vlaneseq
    %v707 = vshrl.u32 %v706, 7
    %v708 = vsub.s32 0, %v707
    %v709 = vrot.slane %v705, %v708
    %710 = vset.pattern.permute.xlu0 0
    %711 = vperm.xlu0 %710, %v690
    %v712 = vpop.permute.xlu0 %711
    %v713 = vlaneseq
    %v714 = vshrl.u32 %v713, 7
    %v715 = vsub.s32 0, %v714
    %v716 = vrot.slane %v712, %v715
    %717 = vset.pattern.permute.xlu0 0
    %718 = vperm.xlu0 %717, %v691
    %v719 = vpop.permute.xlu0 %718
    %v720 = vlaneseq
    %v721 = vshrl.u32 %v720, 7
    %v722 = vsub.s32 0, %v721
    %v723 = vrot.slane %v719, %v722
    %724 = vset.pattern.permute.xlu0 0
    %725 = vperm.xlu0 %724, %v692
    %v726 = vpop.permute.xlu0 %725
    %v727 = vlaneseq
    %v728 = vshrl.u32 %v727, 7
    %v729 = vsub.s32 0, %v728
    %v730 = vrot.slane %v726, %v729
    %731 = vset.pattern.permute.xlu0 0
    %732 = vperm.xlu0 %731, %v693
    %v733 = vpop.permute.xlu0 %732
    %v734 = vlaneseq
    %v735 = vshrl.u32 %v734, 7
    %v736 = vsub.s32 0, %v735
    %v737 = vrot.slane %v733, %v736
    %738 = vset.pattern.permute.xlu0 0
    %739 = vperm.xlu0 %738, %v694
    %v740 = vpop.permute.xlu0 %739
    %v741 = vlaneseq
    %v742 = vshrl.u32 %v741, 7
    %v743 = vsub.s32 0, %v742
    %v744 = vrot.slane %v740, %v743
    %745 = vset.pattern.permute.xlu0 0
    %746 = vperm.xlu0 %745, %v695
    %v747 = vpop.permute.xlu0 %746
    %v748 = vlaneseq
    %v749 = vshrl.u32 %v748, 7
    %v750 = vsub.s32 0, %v749
    %v751 = vrot.slane %v747, %v750
    %vm752 = vcmp.lt.s32.totalorder %v687, %v702
    %vm753 = vcmp.lt.s32.totalorder %v687, %v709
    %vm754 = vcmp.lt.s32.totalorder %v687, %v716
    %vm755 = vcmp.lt.s32.totalorder %v687, %v723
    %vm756 = vcmp.lt.s32.totalorder %v687, %v730
    %vm757 = vcmp.lt.s32.totalorder %v687, %v737
    %vm758 = vcmp.lt.s32.totalorder %v687, %v744
    %vm759 = vcmp.lt.s32.totalorder %v687, %v751
    %v760 = vsel %vm752, 1, 0
    %v761 = vsel %vm753, 1, 0
    %v762 = vsel %vm754, 1, 0
    %v763 = vsel %vm755, 1, 0
    %v764 = vsel %vm756, 1, 0
    %v765 = vsel %vm757, 1, 0
    %v766 = vsel %vm758, 1, 0
    %v767 = vsel %vm759, 1, 0
    %v768 = vcvt.s32.f32 %v760
    %v769 = vcvt.s32.f32 %v761
    %v770 = vcvt.s32.f32 %v762
    %v771 = vcvt.s32.f32 %v763
    %v772 = vcvt.s32.f32 %v764
    %v773 = vcvt.s32.f32 %v765
    %v774 = vcvt.s32.f32 %v766
    %v775 = vcvt.s32.f32 %v767
    %v776 = vmul.f32 %v671, %v768
    %v777 = vmul.f32 %v673, %v769
    %v778 = vmul.f32 %v675, %v770
    %v779 = vmul.f32 %v677, %v771
    %v780 = vmul.f32 %v679, %v772
    %v781 = vmul.f32 %v681, %v773
    %v782 = vmul.f32 %v683, %v774
    %v783 = vmul.f32 %v685, %v775
    %v784 = vsel %vm637, %v776, 0.0
    %785 = vadd.xlane.f32.xlu0 %v784
    %v786 = vpop.xlane.xlu0 %785
    %v787 = vsel %vm637, %v777, 0.0
    %788 = vadd.xlane.f32.xlu0 %v787
    %v789 = vpop.xlane.xlu0 %788
    %v790 = vsel %vm637, %v778, 0.0
    %791 = vadd.xlane.f32.xlu0 %v790
    %v792 = vpop.xlane.xlu0 %791
    %v793 = vsel %vm637, %v779, 0.0
    %794 = vadd.xlane.f32.xlu0 %v793
    %v795 = vpop.xlane.xlu0 %794
    %v796 = vsel %vm637, %v780, 0.0
    %797 = vadd.xlane.f32.xlu0 %v796
    %v798 = vpop.xlane.xlu0 %797
    %v799 = vsel %vm637, %v781, 0.0
    %800 = vadd.xlane.f32.xlu0 %v799
    %v801 = vpop.xlane.xlu0 %800
    %v802 = vsel %vm637, %v782, 0.0
    %803 = vadd.xlane.f32.xlu0 %v802
    %v804 = vpop.xlane.xlu0 %803
    %v805 = vsel %vm637, %v783, 0.0
    %806 = vadd.xlane.f32.xlu0 %v805
    %v807 = vpop.xlane.xlu0 %806
    %v808 = vrcp.pop %v786
    %v809 = vrcp.pop %v789
    %v810 = vrcp.pop %v792
    %v811 = vrcp.pop %v795
    %v812 = vrcp.pop %v798
    %v813 = vrcp.pop %v801
    %v814 = vrcp.pop %v804
    %v815 = vrcp.pop %v807
    %v816 = vmul.f32 %v776, %v808
    %v817 = vmul.f32 %v777, %v809
    %v818 = vmul.f32 %v778, %v810
    %v819 = vmul.f32 %v779, %v811
    %v820 = vmul.f32 %v780, %v812
    %v821 = vmul.f32 %v781, %v813
    %v822 = vmul.f32 %v782, %v814
    %v823 = vmul.f32 %v783, %v815
    %824 = vst.msk [vmem:[#allocation6] sm:$0x1] %vm637, %v816
    %825 = vst.msk [vmem:[#allocation6 + $0x1] sm:$0x1] %vm637, %v817
    %826 = vst.msk [vmem:[#allocation6 + $0x2] sm:$0x1] %vm637, %v818
    %827 = vst.msk [vmem:[#allocation6 + $0x3] sm:$0x1] %vm637, %v819
    %828 = vst.msk [vmem:[#allocation6 + $0x4] sm:$0x1] %vm637, %v820
    %829 = vst.msk [vmem:[#allocation6 + $0x5] sm:$0x1] %vm637, %v821
    %830 = vst.msk [vmem:[#allocation6 + $0x6] sm:$0x1] %vm637, %v822
    %831 = vst.msk [vmem:[#allocation6 + $0x7] sm:$0x1] %vm637, %v823
    %vm832 = vcmask 64512
    %v834 = vsel %vm832, %v816, 0
    %836 = vmatprep.subr.mxu0 0.0
    %837 = vmatpush1.msra.mxu0 0.0
    %838 = vmatprep.subr.mxu0 0.0
    %839 = vmatpush1.msra.mxu0 0.0
    %840 = vmatprep.subr.mxu0 0.0
    %841 = vmatpush1.msra.mxu0 0.0
    %842 = vmatprep.subr.mxu0 0.0
    %843 = vmatpush1.msra.mxu0 0.0
    %844 = vmatprep.subr.mxu0 0.0
    %845 = vmatpush1.msra.mxu0 0.0
    %846 = vmatprep.subr.mxu0 0.0
    %847 = vmatpush1.msra.mxu0 0.0
    %848 = vmatprep.subr.mxu0 0.0
    %849 = vmatpush1.msra.mxu0 0.0
    %850 = vmatprep.subr.mxu0 0.0
    %851 = vmatpush1.msra.mxu0 0.0
    %852 = vmatprep.subr.mxu0 0.0
    %853 = vmatpush1.msra.mxu0 0.0
    %854 = vmatprep.subr.mxu0 0.0
    %855 = vmatpush1.msra.mxu0 0.0
    %856 = vmatprep.subr.mxu0 0.0
    %857 = vmatpush1.msra.mxu0 0.0
    %858 = vmatprep.subr.mxu0 0.0
    %859 = vmatpush1.msra.mxu0 0.0
    %860 = vmatprep.subr.mxu0 0.0
    %861 = vmatpush1.msra.mxu0 0.0
    %862 = vmatprep.subr.mxu0 0.0
    %863 = vmatpush1.msra.mxu0 0.0
    %864 = vmatprep.subr.mxu0 0.0
    %865 = vmatpush1.msra.mxu0 0.0
    %866 = vmatprep.subr.mxu0 0.0
    %867 = vmatpush1.msra.mxu0 %v32
    %868 = vmatprep.subr.mxu0 0.0
    %869 = vmatpush2.msra.mxu0 0.0
    %870 = vmatprep.subr.mxu0 0.0
    %871 = vmatpush2.msra.mxu0 0.0
    %872 = vmatprep.subr.mxu0 0.0
    %873 = vmatpush2.msra.mxu0 0.0
    %874 = vmatprep.subr.mxu0 0.0
    %875 = vmatpush2.msra.mxu0 0.0
    %876 = vmatprep.subr.mxu0 0.0
    %877 = vmatpush2.msra.mxu0 0.0
    %878 = vmatprep.subr.mxu0 0.0
    %879 = vmatpush2.msra.mxu0 0.0
    %880 = vmatprep.subr.mxu0 0.0
    %881 = vmatpush2.msra.mxu0 0.0
    %882 = vmatprep.subr.mxu0 0.0
    %883 = vmatpush2.msra.mxu0 0.0
    %884 = vmatprep.subr.mxu0 0.0
    %885 = vmatpush2.msra.mxu0 0.0
    %886 = vmatprep.subr.mxu0 0.0
    %887 = vmatpush2.msra.mxu0 0.0
    %888 = vmatprep.subr.mxu0 0.0
    %889 = vmatpush2.msra.mxu0 0.0
    %890 = vmatprep.subr.mxu0 0.0
    %891 = vmatpush2.msra.mxu0 0.0
    %892 = vmatprep.subr.mxu0 0.0
    %893 = vmatpush2.msra.mxu0 0.0
    %894 = vmatprep.subr.mxu0 0.0
    %895 = vmatpush2.msra.mxu0 0.0
    %896 = vmatprep.subr.mxu0 0.0
    %897 = vmatpush2.msra.mxu0 0.0
    %898 = vmatprep.subr.mxu0 0.0
    %899 = vmatpush2.msra.mxu0 0.0
    %900 = vmatprep.mubr.f32.mxu0 0.0
    %901 = vmatmul.mubr.f32.gmra.mxu0 %v834
    %v902 = vpop.f32.mrf.mxu0
    %v903 = vadd.f32 0.0, %v902
    %v904 = vpop.f32.mrf.mxu0
    %905 = vdwg.mxu0
    %v907 = vsel %vm832, %v817, 0
    %909 = vmatprep.subr.mxu0 0.0
    %910 = vmatpush1.msra.mxu0 0.0
    %911 = vmatprep.subr.mxu0 0.0
    %912 = vmatpush1.msra.mxu0 0.0
    %913 = vmatprep.subr.mxu0 0.0
    %914 = vmatpush1.msra.mxu0 0.0
    %915 = vmatprep.subr.mxu0 0.0
    %916 = vmatpush1.msra.mxu0 0.0
    %917 = vmatprep.subr.mxu0 0.0
    %918 = vmatpush1.msra.mxu0 0.0
    %919 = vmatprep.subr.mxu0 0.0
    %920 = vmatpush1.msra.mxu0 0.0
    %921 = vmatprep.subr.mxu0 0.0
    %922 = vmatpush1.msra.mxu0 0.0
    %923 = vmatprep.subr.mxu0 0.0
    %924 = vmatpush1.msra.mxu0 0.0
    %925 = vmatprep.subr.mxu0 0.0
    %926 = vmatpush1.msra.mxu0 0.0
    %927 = vmatprep.subr.mxu0 0.0
    %928 = vmatpush1.msra.mxu0 0.0
    %929 = vmatprep.subr.mxu0 0.0
    %930 = vmatpush1.msra.mxu0 0.0
    %931 = vmatprep.subr.mxu0 0.0
    %932 = vmatpush1.msra.mxu0 0.0
    %933 = vmatprep.subr.mxu0 0.0
    %934 = vmatpush1.msra.mxu0 0.0
    %935 = vmatprep.subr.mxu0 0.0
    %936 = vmatpush1.msra.mxu0 0.0
    %937 = vmatprep.subr.mxu0 0.0
    %938 = vmatpush1.msra.mxu0 0.0
    %939 = vmatprep.subr.mxu0 0.0
    %940 = vmatpush1.msra.mxu0 %v33
    %941 = vmatprep.subr.mxu0 0.0
    %942 = vmatpush2.msra.mxu0 0.0
    %943 = vmatprep.subr.mxu0 0.0
    %944 = vmatpush2.msra.mxu0 0.0
    %945 = vmatprep.subr.mxu0 0.0
    %946 = vmatpush2.msra.mxu0 0.0
    %947 = vmatprep.subr.mxu0 0.0
    %948 = vmatpush2.msra.mxu0 0.0
    %949 = vmatprep.subr.mxu0 0.0
    %950 = vmatpush2.msra.mxu0 0.0
    %951 = vmatprep.subr.mxu0 0.0
    %952 = vmatpush2.msra.mxu0 0.0
    %953 = vmatprep.subr.mxu0 0.0
    %954 = vmatpush2.msra.mxu0 0.0
    %955 = vmatprep.subr.mxu0 0.0
    %956 = vmatpush2.msra.mxu0 0.0
    %957 = vmatprep.subr.mxu0 0.0
    %958 = vmatpush2.msra.mxu0 0.0
    %959 = vmatprep.subr.mxu0 0.0
    %960 = vmatpush2.msra.mxu0 0.0
    %961 = vmatprep.subr.mxu0 0.0
    %962 = vmatpush2.msra.mxu0 0.0
    %963 = vmatprep.subr.mxu0 0.0
    %964 = vmatpush2.msra.mxu0 0.0
    %965 = vmatprep.subr.mxu0 0.0
    %966 = vmatpush2.msra.mxu0 0.0
    %967 = vmatprep.subr.mxu0 0.0
    %968 = vmatpush2.msra.mxu0 0.0
    %969 = vmatprep.subr.mxu0 0.0
    %970 = vmatpush2.msra.mxu0 0.0
    %971 = vmatprep.subr.mxu0 0.0
    %972 = vmatpush2.msra.mxu0 0.0
    %973 = vmatprep.mubr.f32.mxu0 0.0
    %974 = vmatmul.mubr.f32.gmra.mxu0 %v907
    %v975 = vpop.f32.mrf.mxu0
    %v976 = vadd.f32 0.0, %v975
    %v977 = vpop.f32.mrf.mxu0
    %978 = vdwg.mxu0
    %v980 = vsel %vm832, %v818, 0
    %982 = vmatprep.subr.mxu0 0.0
    %983 = vmatpush1.msra.mxu0 0.0
    %984 = vmatprep.subr.mxu0 0.0
    %985 = vmatpush1.msra.mxu0 0.0
    %986 = vmatprep.subr.mxu0 0.0
    %987 = vmatpush1.msra.mxu0 0.0
    %988 = vmatprep.subr.mxu0 0.0
    %989 = vmatpush1.msra.mxu0 0.0
    %990 = vmatprep.subr.mxu0 0.0
    %991 = vmatpush1.msra.mxu0 0.0
    %992 = vmatprep.subr.mxu0 0.0
    %993 = vmatpush1.msra.mxu0 0.0
    %994 = vmatprep.subr.mxu0 0.0
    %995 = vmatpush1.msra.mxu0 0.0
    %996 = vmatprep.subr.mxu0 0.0
    %997 = vmatpush1.msra.mxu0 0.0
    %998 = vmatprep.subr.mxu0 0.0
    %999 = vmatpush1.msra.mxu0 0.0
    %1000 = vmatprep.subr.mxu0 0.0
    %1001 = vmatpush1.msra.mxu0 0.0
    %1002 = vmatprep.subr.mxu0 0.0
    %1003 = vmatpush1.msra.mxu0 0.0
    %1004 = vmatprep.subr.mxu0 0.0
    %1005 = vmatpush1.msra.mxu0 0.0
    %1006 = vmatprep.subr.mxu0 0.0
    %1007 = vmatpush1.msra.mxu0 0.0
    %1008 = vmatprep.subr.mxu0 0.0
    %1009 = vmatpush1.msra.mxu0 0.0
    %1010 = vmatprep.subr.mxu0 0.0
    %1011 = vmatpush1.msra.mxu0 0.0
    %1012 = vmatprep.subr.mxu0 0.0
    %1013 = vmatpush1.msra.mxu0 %v34
    %1014 = vmatprep.subr.mxu0 0.0
    %1015 = vmatpush2.msra.mxu0 0.0
    %1016 = vmatprep.subr.mxu0 0.0
    %1017 = vmatpush2.msra.mxu0 0.0
    %1018 = vmatprep.subr.mxu0 0.0
    %1019 = vmatpush2.msra.mxu0 0.0
    %1020 = vmatprep.subr.mxu0 0.0
    %1021 = vmatpush2.msra.mxu0 0.0
    %1022 = vmatprep.subr.mxu0 0.0
    %1023 = vmatpush2.msra.mxu0 0.0
    %1024 = vmatprep.subr.mxu0 0.0
    %1025 = vmatpush2.msra.mxu0 0.0
    %1026 = vmatprep.subr.mxu0 0.0
    %1027 = vmatpush2.msra.mxu0 0.0
    %1028 = vmatprep.subr.mxu0 0.0
    %1029 = vmatpush2.msra.mxu0 0.0
    %1030 = vmatprep.subr.mxu0 0.0
    %1031 = vmatpush2.msra.mxu0 0.0
    %1032 = vmatprep.subr.mxu0 0.0
    %1033 = vmatpush2.msra.mxu0 0.0
    %1034 = vmatprep.subr.mxu0 0.0
    %1035 = vmatpush2.msra.mxu0 0.0
    %1036 = vmatprep.subr.mxu0 0.0
    %1037 = vmatpush2.msra.mxu0 0.0
    %1038 = vmatprep.subr.mxu0 0.0
    %1039 = vmatpush2.msra.mxu0 0.0
    %1040 = vmatprep.subr.mxu0 0.0
    %1041 = vmatpush2.msra.mxu0 0.0
    %1042 = vmatprep.subr.mxu0 0.0
    %1043 = vmatpush2.msra.mxu0 0.0
    %1044 = vmatprep.subr.mxu0 0.0
    %1045 = vmatpush2.msra.mxu0 0.0
    %1046 = vmatprep.mubr.f32.mxu0 0.0
    %1047 = vmatmul.mubr.f32.gmra.mxu0 %v980
    %v1048 = vpop.f32.mrf.mxu0
    %v1049 = vadd.f32 0.0, %v1048
    %v1050 = vpop.f32.mrf.mxu0
    %1051 = vdwg.mxu0
    %v1053 = vsel %vm832, %v819, 0
    %1055 = vmatprep.subr.mxu0 0.0
    %1056 = vmatpush1.msra.mxu0 0.0
    %1057 = vmatprep.subr.mxu0 0.0
    %1058 = vmatpush1.msra.mxu0 0.0
    %1059 = vmatprep.subr.mxu0 0.0
    %1060 = vmatpush1.msra.mxu0 0.0
    %1061 = vmatprep.subr.mxu0 0.0
    %1062 = vmatpush1.msra.mxu0 0.0
    %1063 = vmatprep.subr.mxu0 0.0
    %1064 = vmatpush1.msra.mxu0 0.0
    %1065 = vmatprep.subr.mxu0 0.0
    %1066 = vmatpush1.msra.mxu0 0.0
    %1067 = vmatprep.subr.mxu0 0.0
    %1068 = vmatpush1.msra.mxu0 0.0
    %1069 = vmatprep.subr.mxu0 0.0
    %1070 = vmatpush1.msra.mxu0 0.0
    %1071 = vmatprep.subr.mxu0 0.0
    %1072 = vmatpush1.msra.mxu0 0.0
    %1073 = vmatprep.subr.mxu0 0.0
    %1074 = vmatpush1.msra.mxu0 0.0
    %1075 = vmatprep.subr.mxu0 0.0
    %1076 = vmatpush1.msra.mxu0 0.0
    %1077 = vmatprep.subr.mxu0 0.0
    %1078 = vmatpush1.msra.mxu0 0.0
    %1079 = vmatprep.subr.mxu0 0.0
    %1080 = vmatpush1.msra.mxu0 0.0
    %1081 = vmatprep.subr.mxu0 0.0
    %1082 = vmatpush1.msra.mxu0 0.0
    %1083 = vmatprep.subr.mxu0 0.0
    %1084 = vmatpush1.msra.mxu0 0.0
    %1085 = vmatprep.subr.mxu0 0.0
    %1086 = vmatpush1.msra.mxu0 %v35
    %1087 = vmatprep.subr.mxu0 0.0
    %1088 = vmatpush2.msra.mxu0 0.0
    %1089 = vmatprep.subr.mxu0 0.0
    %1090 = vmatpush2.msra.mxu0 0.0
    %1091 = vmatprep.subr.mxu0 0.0
    %1092 = vmatpush2.msra.mxu0 0.0
    %1093 = vmatprep.subr.mxu0 0.0
    %1094 = vmatpush2.msra.mxu0 0.0
    %1095 = vmatprep.subr.mxu0 0.0
    %1096 = vmatpush2.msra.mxu0 0.0
    %1097 = vmatprep.subr.mxu0 0.0
    %1098 = vmatpush2.msra.mxu0 0.0
    %1099 = vmatprep.subr.mxu0 0.0
    %1100 = vmatpush2.msra.mxu0 0.0
    %1101 = vmatprep.subr.mxu0 0.0
    %1102 = vmatpush2.msra.mxu0 0.0
    %1103 = vmatprep.subr.mxu0 0.0
    %1104 = vmatpush2.msra.mxu0 0.0
    %1105 = vmatprep.subr.mxu0 0.0
    %1106 = vmatpush2.msra.mxu0 0.0
    %1107 = vmatprep.subr.mxu0 0.0
    %1108 = vmatpush2.msra.mxu0 0.0
    %1109 = vmatprep.subr.mxu0 0.0
    %1110 = vmatpush2.msra.mxu0 0.0
    %1111 = vmatprep.subr.mxu0 0.0
    %1112 = vmatpush2.msra.mxu0 0.0
    %1113 = vmatprep.subr.mxu0 0.0
    %1114 = vmatpush2.msra.mxu0 0.0
    %1115 = vmatprep.subr.mxu0 0.0
    %1116 = vmatpush2.msra.mxu0 0.0
    %1117 = vmatprep.subr.mxu0 0.0
    %1118 = vmatpush2.msra.mxu0 0.0
    %1119 = vmatprep.mubr.f32.mxu0 0.0
    %1120 = vmatmul.mubr.f32.gmra.mxu0 %v1053
    %v1121 = vpop.f32.mrf.mxu0
    %v1122 = vadd.f32 0.0, %v1121
    %v1123 = vpop.f32.mrf.mxu0
    %1124 = vdwg.mxu0
    %v1126 = vsel %vm832, %v820, 0
    %1128 = vmatprep.subr.mxu0 0.0
    %1129 = vmatpush1.msra.mxu0 0.0
    %1130 = vmatprep.subr.mxu0 0.0
    %1131 = vmatpush1.msra.mxu0 0.0
    %1132 = vmatprep.subr.mxu0 0.0
    %1133 = vmatpush1.msra.mxu0 0.0
    %1134 = vmatprep.subr.mxu0 0.0
    %1135 = vmatpush1.msra.mxu0 0.0
    %1136 = vmatprep.subr.mxu0 0.0
    %1137 = vmatpush1.msra.mxu0 0.0
    %1138 = vmatprep.subr.mxu0 0.0
    %1139 = vmatpush1.msra.mxu0 0.0
    %1140 = vmatprep.subr.mxu0 0.0
    %1141 = vmatpush1.msra.mxu0 0.0
    %1142 = vmatprep.subr.mxu0 0.0
    %1143 = vmatpush1.msra.mxu0 0.0
    %1144 = vmatprep.subr.mxu0 0.0
    %1145 = vmatpush1.msra.mxu0 0.0
    %1146 = vmatprep.subr.mxu0 0.0
    %1147 = vmatpush1.msra.mxu0 0.0
    %1148 = vmatprep.subr.mxu0 0.0
    %1149 = vmatpush1.msra.mxu0 0.0
    %1150 = vmatprep.subr.mxu0 0.0
    %1151 = vmatpush1.msra.mxu0 0.0
    %1152 = vmatprep.subr.mxu0 0.0
    %1153 = vmatpush1.msra.mxu0 0.0
    %1154 = vmatprep.subr.mxu0 0.0
    %1155 = vmatpush1.msra.mxu0 0.0
    %1156 = vmatprep.subr.mxu0 0.0
    %1157 = vmatpush1.msra.mxu0 0.0
    %1158 = vmatprep.subr.mxu0 0.0
    %1159 = vmatpush1.msra.mxu0 %v36
    %1160 = vmatprep.subr.mxu0 0.0
    %1161 = vmatpush2.msra.mxu0 0.0
    %1162 = vmatprep.subr.mxu0 0.0
    %1163 = vmatpush2.msra.mxu0 0.0
    %1164 = vmatprep.subr.mxu0 0.0
    %1165 = vmatpush2.msra.mxu0 0.0
    %1166 = vmatprep.subr.mxu0 0.0
    %1167 = vmatpush2.msra.mxu0 0.0
    %1168 = vmatprep.subr.mxu0 0.0
    %1169 = vmatpush2.msra.mxu0 0.0
    %1170 = vmatprep.subr.mxu0 0.0
    %1171 = vmatpush2.msra.mxu0 0.0
    %1172 = vmatprep.subr.mxu0 0.0
    %1173 = vmatpush2.msra.mxu0 0.0
    %1174 = vmatprep.subr.mxu0 0.0
    %1175 = vmatpush2.msra.mxu0 0.0
    %1176 = vmatprep.subr.mxu0 0.0
    %1177 = vmatpush2.msra.mxu0 0.0
    %1178 = vmatprep.subr.mxu0 0.0
    %1179 = vmatpush2.msra.mxu0 0.0
    %1180 = vmatprep.subr.mxu0 0.0
    %1181 = vmatpush2.msra.mxu0 0.0
    %1182 = vmatprep.subr.mxu0 0.0
    %1183 = vmatpush2.msra.mxu0 0.0
    %1184 = vmatprep.subr.mxu0 0.0
    %1185 = vmatpush2.msra.mxu0 0.0
    %1186 = vmatprep.subr.mxu0 0.0
    %1187 = vmatpush2.msra.mxu0 0.0
    %1188 = vmatprep.subr.mxu0 0.0
    %1189 = vmatpush2.msra.mxu0 0.0
    %1190 = vmatprep.subr.mxu0 0.0
    %1191 = vmatpush2.msra.mxu0 0.0
    %1192 = vmatprep.mubr.f32.mxu0 0.0
    %1193 = vmatmul.mubr.f32.gmra.mxu0 %v1126
    %v1194 = vpop.f32.mrf.mxu0
    %v1195 = vadd.f32 0.0, %v1194
    %v1196 = vpop.f32.mrf.mxu0
    %1197 = vdwg.mxu0
    %v1199 = vsel %vm832, %v821, 0
    %1201 = vmatprep.subr.mxu0 0.0
    %1202 = vmatpush1.msra.mxu0 0.0
    %1203 = vmatprep.subr.mxu0 0.0
    %1204 = vmatpush1.msra.mxu0 0.0
    %1205 = vmatprep.subr.mxu0 0.0
    %1206 = vmatpush1.msra.mxu0 0.0
    %1207 = vmatprep.subr.mxu0 0.0
    %1208 = vmatpush1.msra.mxu0 0.0
    %1209 = vmatprep.subr.mxu0 0.0
    %1210 = vmatpush1.msra.mxu0 0.0
    %1211 = vmatprep.subr.mxu0 0.0
    %1212 = vmatpush1.msra.mxu0 0.0
    %1213 = vmatprep.subr.mxu0 0.0
    %1214 = vmatpush1.msra.mxu0 0.0
    %1215 = vmatprep.subr.mxu0 0.0
    %1216 = vmatpush1.msra.mxu0 0.0
    %1217 = vmatprep.subr.mxu0 0.0
    %1218 = vmatpush1.msra.mxu0 0.0
    %1219 = vmatprep.subr.mxu0 0.0
    %1220 = vmatpush1.msra.mxu0 0.0
    %1221 = vmatprep.subr.mxu0 0.0
    %1222 = vmatpush1.msra.mxu0 0.0
    %1223 = vmatprep.subr.mxu0 0.0
    %1224 = vmatpush1.msra.mxu0 0.0
    %1225 = vmatprep.subr.mxu0 0.0
    %1226 = vmatpush1.msra.mxu0 0.0
    %1227 = vmatprep.subr.mxu0 0.0
    %1228 = vmatpush1.msra.mxu0 0.0
    %1229 = vmatprep.subr.mxu0 0.0
    %1230 = vmatpush1.msra.mxu0 0.0
    %1231 = vmatprep.subr.mxu0 0.0
    %1232 = vmatpush1.msra.mxu0 %v37
    %1233 = vmatprep.subr.mxu0 0.0
    %1234 = vmatpush2.msra.mxu0 0.0
    %1235 = vmatprep.subr.mxu0 0.0
    %1236 = vmatpush2.msra.mxu0 0.0
    %1237 = vmatprep.subr.mxu0 0.0
    %1238 = vmatpush2.msra.mxu0 0.0
    %1239 = vmatprep.subr.mxu0 0.0
    %1240 = vmatpush2.msra.mxu0 0.0
    %1241 = vmatprep.subr.mxu0 0.0
    %1242 = vmatpush2.msra.mxu0 0.0
    %1243 = vmatprep.subr.mxu0 0.0
    %1244 = vmatpush2.msra.mxu0 0.0
    %1245 = vmatprep.subr.mxu0 0.0
    %1246 = vmatpush2.msra.mxu0 0.0
    %1247 = vmatprep.subr.mxu0 0.0
    %1248 = vmatpush2.msra.mxu0 0.0
    %1249 = vmatprep.subr.mxu0 0.0
    %1250 = vmatpush2.msra.mxu0 0.0
    %1251 = vmatprep.subr.mxu0 0.0
    %1252 = vmatpush2.msra.mxu0 0.0
    %1253 = vmatprep.subr.mxu0 0.0
    %1254 = vmatpush2.msra.mxu0 0.0
    %1255 = vmatprep.subr.mxu0 0.0
    %1256 = vmatpush2.msra.mxu0 0.0
    %1257 = vmatprep.subr.mxu0 0.0
    %1258 = vmatpush2.msra.mxu0 0.0
    %1259 = vmatprep.subr.mxu0 0.0
    %1260 = vmatpush2.msra.mxu0 0.0
    %1261 = vmatprep.subr.mxu0 0.0
    %1262 = vmatpush2.msra.mxu0 0.0
    %1263 = vmatprep.subr.mxu0 0.0
    %1264 = vmatpush2.msra.mxu0 0.0
    %1265 = vmatprep.mubr.f32.mxu0 0.0
    %1266 = vmatmul.mubr.f32.gmra.mxu0 %v1199
    %v1267 = vpop.f32.mrf.mxu0
    %v1268 = vadd.f32 0.0, %v1267
    %v1269 = vpop.f32.mrf.mxu0
    %1270 = vdwg.mxu0
    %v1272 = vsel %vm832, %v822, 0
    %1274 = vmatprep.subr.mxu0 0.0
    %1275 = vmatpush1.msra.mxu0 0.0
    %1276 = vmatprep.subr.mxu0 0.0
    %1277 = vmatpush1.msra.mxu0 0.0
    %1278 = vmatprep.subr.mxu0 0.0
    %1279 = vmatpush1.msra.mxu0 0.0
    %1280 = vmatprep.subr.mxu0 0.0
    %1281 = vmatpush1.msra.mxu0 0.0
    %1282 = vmatprep.subr.mxu0 0.0
    %1283 = vmatpush1.msra.mxu0 0.0
    %1284 = vmatprep.subr.mxu0 0.0
    %1285 = vmatpush1.msra.mxu0 0.0
    %1286 = vmatprep.subr.mxu0 0.0
    %1287 = vmatpush1.msra.mxu0 0.0
    %1288 = vmatprep.subr.mxu0 0.0
    %1289 = vmatpush1.msra.mxu0 0.0
    %1290 = vmatprep.subr.mxu0 0.0
    %1291 = vmatpush1.msra.mxu0 0.0
    %1292 = vmatprep.subr.mxu0 0.0
    %1293 = vmatpush1.msra.mxu0 0.0
    %1294 = vmatprep.subr.mxu0 0.0
    %1295 = vmatpush1.msra.mxu0 0.0
    %1296 = vmatprep.subr.mxu0 0.0
    %1297 = vmatpush1.msra.mxu0 0.0
    %1298 = vmatprep.subr.mxu0 0.0
    %1299 = vmatpush1.msra.mxu0 0.0
    %1300 = vmatprep.subr.mxu0 0.0
    %1301 = vmatpush1.msra.mxu0 0.0
    %1302 = vmatprep.subr.mxu0 0.0
    %1303 = vmatpush1.msra.mxu0 0.0
    %1304 = vmatprep.subr.mxu0 0.0
    %1305 = vmatpush1.msra.mxu0 %v38
    %1306 = vmatprep.subr.mxu0 0.0
    %1307 = vmatpush2.msra.mxu0 0.0
    %1308 = vmatprep.subr.mxu0 0.0
    %1309 = vmatpush2.msra.mxu0 0.0
    %1310 = vmatprep.subr.mxu0 0.0
    %1311 = vmatpush2.msra.mxu0 0.0
    %1312 = vmatprep.subr.mxu0 0.0
    %1313 = vmatpush2.msra.mxu0 0.0
    %1314 = vmatprep.subr.mxu0 0.0
    %1315 = vmatpush2.msra.mxu0 0.0
    %1316 = vmatprep.subr.mxu0 0.0
    %1317 = vmatpush2.msra.mxu0 0.0
    %1318 = vmatprep.subr.mxu0 0.0
    %1319 = vmatpush2.msra.mxu0 0.0
    %1320 = vmatprep.subr.mxu0 0.0
    %1321 = vmatpush2.msra.mxu0 0.0
    %1322 = vmatprep.subr.mxu0 0.0
    %1323 = vmatpush2.msra.mxu0 0.0
    %1324 = vmatprep.subr.mxu0 0.0
    %1325 = vmatpush2.msra.mxu0 0.0
    %1326 = vmatprep.subr.mxu0 0.0
    %1327 = vmatpush2.msra.mxu0 0.0
    %1328 = vmatprep.subr.mxu0 0.0
    %1329 = vmatpush2.msra.mxu0 0.0
    %1330 = vmatprep.subr.mxu0 0.0
    %1331 = vmatpush2.msra.mxu0 0.0
    %1332 = vmatprep.subr.mxu0 0.0
    %1333 = vmatpush2.msra.mxu0 0.0
    %1334 = vmatprep.subr.mxu0 0.0
    %1335 = vmatpush2.msra.mxu0 0.0
    %1336 = vmatprep.subr.mxu0 0.0
    %1337 = vmatpush2.msra.mxu0 0.0
    %1338 = vmatprep.mubr.f32.mxu0 0.0
    %1339 = vmatmul.mubr.f32.gmra.mxu0 %v1272
    %v1340 = vpop.f32.mrf.mxu0
    %v1341 = vadd.f32 0.0, %v1340
    %v1342 = vpop.f32.mrf.mxu0
    %1343 = vdwg.mxu0
    %v1345 = vsel %vm832, %v823, 0
    %1347 = vmatprep.subr.mxu0 0.0
    %1348 = vmatpush1.msra.mxu0 0.0
    %1349 = vmatprep.subr.mxu0 0.0
    %1350 = vmatpush1.msra.mxu0 0.0
    %1351 = vmatprep.subr.mxu0 0.0
    %1352 = vmatpush1.msra.mxu0 0.0
    %1353 = vmatprep.subr.mxu0 0.0
    %1354 = vmatpush1.msra.mxu0 0.0
    %1355 = vmatprep.subr.mxu0 0.0
    %1356 = vmatpush1.msra.mxu0 0.0
    %1357 = vmatprep.subr.mxu0 0.0
    %1358 = vmatpush1.msra.mxu0 0.0
    %1359 = vmatprep.subr.mxu0 0.0
    %1360 = vmatpush1.msra.mxu0 0.0
    %1361 = vmatprep.subr.mxu0 0.0
    %1362 = vmatpush1.msra.mxu0 0.0
    %1363 = vmatprep.subr.mxu0 0.0
    %1364 = vmatpush1.msra.mxu0 0.0
    %1365 = vmatprep.subr.mxu0 0.0
    %1366 = vmatpush1.msra.mxu0 0.0
    %1367 = vmatprep.subr.mxu0 0.0
    %1368 = vmatpush1.msra.mxu0 0.0
    %1369 = vmatprep.subr.mxu0 0.0
    %1370 = vmatpush1.msra.mxu0 0.0
    %1371 = vmatprep.subr.mxu0 0.0
    %1372 = vmatpush1.msra.mxu0 0.0
    %1373 = vmatprep.subr.mxu0 0.0
    %1374 = vmatpush1.msra.mxu0 0.0
    %1375 = vmatprep.subr.mxu0 0.0
    %1376 = vmatpush1.msra.mxu0 0.0
    %1377 = vmatprep.subr.mxu0 0.0
    %1378 = vmatpush1.msra.mxu0 %v39
    %1379 = vmatprep.subr.mxu0 0.0
    %1380 = vmatpush2.msra.mxu0 0.0
    %1381 = vmatprep.subr.mxu0 0.0
    %1382 = vmatpush2.msra.mxu0 0.0
    %1383 = vmatprep.subr.mxu0 0.0
    %1384 = vmatpush2.msra.mxu0 0.0
    %1385 = vmatprep.subr.mxu0 0.0
    %1386 = vmatpush2.msra.mxu0 0.0
    %1387 = vmatprep.subr.mxu0 0.0
    %1388 = vmatpush2.msra.mxu0 0.0
    %1389 = vmatprep.subr.mxu0 0.0
    %1390 = vmatpush2.msra.mxu0 0.0
    %1391 = vmatprep.subr.mxu0 0.0
    %1392 = vmatpush2.msra.mxu0 0.0
    %1393 = vmatprep.subr.mxu0 0.0
    %1394 = vmatpush2.msra.mxu0 0.0
    %1395 = vmatprep.subr.mxu0 0.0
    %1396 = vmatpush2.msra.mxu0 0.0
    %1397 = vmatprep.subr.mxu0 0.0
    %1398 = vmatpush2.msra.mxu0 0.0
    %1399 = vmatprep.subr.mxu0 0.0
    %1400 = vmatpush2.msra.mxu0 0.0
    %1401 = vmatprep.subr.mxu0 0.0
    %1402 = vmatpush2.msra.mxu0 0.0
    %1403 = vmatprep.subr.mxu0 0.0
    %1404 = vmatpush2.msra.mxu0 0.0
    %1405 = vmatprep.subr.mxu0 0.0
    %1406 = vmatpush2.msra.mxu0 0.0
    %1407 = vmatprep.subr.mxu0 0.0
    %1408 = vmatpush2.msra.mxu0 0.0
    %1409 = vmatprep.subr.mxu0 0.0
    %1410 = vmatpush2.msra.mxu0 0.0
    %1411 = vmatprep.mubr.f32.mxu0 0.0
    %1412 = vmatmul.mubr.f32.gmra.mxu0 %v1345
    %v1413 = vpop.f32.mrf.mxu0
    %v1414 = vadd.f32 0.0, %v1413
    %v1415 = vpop.f32.mrf.mxu0
    %1416 = vdwg.mxu0
    %vm1417 = vcmask 253952
    %1418 = vst.msk [vmem:[#allocation5] sm:$0x1] %vm1417, %v903
    %1419 = vst.msk [vmem:[#allocation5 + $0x1] sm:$0x1] %vm1417, %v976
    %1420 = vst.msk [vmem:[#allocation5 + $0x2] sm:$0x1] %vm1417, %v1049
    %1421 = vst.msk [vmem:[#allocation5 + $0x3] sm:$0x1] %vm1417, %v1122
    %1422 = vst.msk [vmem:[#allocation5 + $0x4] sm:$0x1] %vm1417, %v1195
    %1423 = vst.msk [vmem:[#allocation5 + $0x5] sm:$0x1] %vm1417, %v1268
    %1424 = vst.msk [vmem:[#allocation5 + $0x6] sm:$0x1] %vm1417, %v1341
    %1425 = vst.msk [vmem:[#allocation5 + $0x7] sm:$0x1] %vm1417, %v1414
    // Predicated region
    $region18: #{tpu_custom_call.1} parent=1 // pred_check
      _
    $region19: #{tpu_custom_call.1} parent=1 // pred_check_branch
      %1427 = sbr.rel (0) target = $region21
    $region20: #{tpu_custom_call.1} parent=1 // pred_region
      %s1429 = ssub.s32 128, 128
      %1430 = vsyncadd [#allocation4], %s1429
      %s1431 = sshll.u32 [#allocation5], 4
      %s1432 = int_to_ptr.vmem [resolvable:$true] %s1431
      %1437 = dma.vmem_to_hbm [thread:$0]  %s1432, 128, %s3, [#allocation4], 16, 16, 1
    $region21: #{tpu_custom_call.1} parent=1 // pred_fallthru
      _
    // Predicated region
    $region22: #{tpu_custom_call.1} parent=1 // pred_check
      _
    $region23: #{tpu_custom_call.1} parent=1 // pred_check_branch
      %1439 = sbr.rel (0) target = $region25
    $region24: #{tpu_custom_call.1} parent=1 // pred_region
      %s1441 = ssub.s32 128, 128
      %1442 = vsyncadd [#allocation7], %s1441
      %s1443 = sshll.u32 [#allocation6], 4
      %s1444 = int_to_ptr.vmem [resolvable:$true] %s1443
      %1449 = dma.vmem_to_hbm [thread:$0]  %s1444, 128, %s4, [#allocation7], 16, 16, 1
    $region25: #{tpu_custom_call.1} parent=1 // pred_fallthru
      _
    // Predicated region
    $region26: #{tpu_custom_call.1} parent=1 // pred_check
      _
    $region27: #{tpu_custom_call.1} parent=1 // pred_check_branch
      %1451 = sbr.rel (0) target = $region29
    $region28: #{tpu_custom_call.1} parent=1 // pred_region
      %1452 = dma.done [#allocation4], 128
    $region29: #{tpu_custom_call.1} parent=1 // pred_fallthru
      _
    // Predicated region
    $region30: #{tpu_custom_call.1} parent=1 // pred_check
      _
    $region31: #{tpu_custom_call.1} parent=1 // pred_check_branch
      %1454 = sbr.rel (0) target = $region33
    $region32: #{tpu_custom_call.1} parent=1 // pred_region
      %1455 = dma.done [#allocation7], 128
    $region33: #{tpu_custom_call.1} parent=1 // pred_fallthru
      _
    %1456 = vsyncpa [#allocation3], 1
    %1457 = vsyncpa [#allocation4], 1
    %1458 = vsyncpa [#allocation7], 1

</llo_original>
